<compile_context>
chip_gen: v7x
topology: tpu7x:2x2x1
jax: 0.10.0
libtpu: 0.0.40
codegen_flags: <defaults>
</compile_context>

<pallas_src>
import jax
import jax.numpy as jnp
from jax.experimental import pallas as pl
from jax.experimental.pallas import tpu as pltpu


def _latent_solver_kernel(z_ref, w1_ref, b1_ref, w2_ref, b2_ref, w3_ref, b3_ref,
                          out_ref, h1_ref, h2_ref):
    # Layer 1: Linear(latent_dim -> hidden_dim) + ReLU (f32 accumulation).
    h1 = jnp.dot(z_ref[...], w1_ref[...], preferred_element_type=jnp.float32)
    h1_ref[...] = jnp.maximum(h1 + b1_ref[...], 0.0)
    # Layer 2: Linear(hidden_dim -> hidden_dim) + ReLU.
    h2 = jnp.dot(h1_ref[...].astype(w2_ref.dtype), w2_ref[...],
                 preferred_element_type=jnp.float32)
    h2_ref[...] = jnp.maximum(h2 + b2_ref[...], 0.0)
    # Layer 3: Linear(hidden_dim -> latent_dim), no activation.
    out = jnp.dot(h2_ref[...].astype(w3_ref.dtype), w3_ref[...],
                  preferred_element_type=jnp.float32)
    out_ref[...] = (out + b3_ref[...]).astype(out_ref.dtype)


def latent_solver_forward(z_in, params, *, tile_b=None,
                          compute_dtype=jnp.float32):
    """z_in: [B, latent_dim] float32. params: dict of w1,b1,w2,b2,w3,b3.

    Weights are stored as [in_features, out_features] (transposed vs.
    nn.Linear) so every layer is x @ W + b. compute_dtype controls the MXU
    operand dtype (f32 or bf16); accumulation / bias / ReLU stay f32.
    """
    B, latent_dim = z_in.shape
    hidden_dim = params["w1"].shape[1]
    assert params["w1"].shape == (latent_dim, hidden_dim)
    assert params["w2"].shape == (hidden_dim, hidden_dim)
    assert params["w3"].shape == (hidden_dim, latent_dim)

    if tile_b is None:
        # Small batch: one grid step covering the whole (row-padded) batch.
        # Large batch: 256-row tiles (fills the MXU on every generation).
        tile_b = ((B + 15) // 16) * 16 if B <= 256 else 256

    padded_b = -(-B // tile_b) * tile_b
    z = z_in if padded_b == B else jnp.pad(z_in, ((0, padded_b - B), (0, 0)))

    # Optional low-precision MXU operands; biases stay f32 for the epilogue.
    z = z.astype(compute_dtype)
    w1 = params["w1"].astype(compute_dtype)
    w2 = params["w2"].astype(compute_dtype)
    w3 = params["w3"].astype(compute_dtype)
    b1, b2, b3 = params["b1"], params["b2"], params["b3"]

    grid = (padded_b // tile_b,)
    # Whole weight/bias arrays resident in VMEM: copied once, no per-step DMA,
    # no double-buffered weight copies.
    resident = pl.BlockSpec(memory_space=pltpu.MemorySpace.VMEM)

    out = pl.pallas_call(
        _latent_solver_kernel,
        out_shape=jax.ShapeDtypeStruct((padded_b, latent_dim), jnp.float32),
        grid_spec=pltpu.PrefetchScalarGridSpec(
            num_scalar_prefetch=0,
            grid=grid,
            in_specs=[
                pl.BlockSpec((tile_b, latent_dim), lambda i: (i, 0)),  # z
                resident, resident,                                    # w1, b1
                resident, resident,                                    # w2, b2
                resident, resident,                                    # w3, b3
            ],
            out_specs=pl.BlockSpec((tile_b, latent_dim), lambda i: (i, 0)),
            scratch_shapes=[
                pltpu.VMEM((tile_b, hidden_dim), jnp.float32),  # h1
                pltpu.VMEM((tile_b, hidden_dim), jnp.float32),  # h2
            ],
        ),
        compiler_params=pltpu.CompilerParams(
            dimension_semantics=("parallel",)),
    )(z, w1, b1, w2, b2, w3, b3)

    return out[:B] if padded_b != B else out


def init_params(key, latent_dim=128, hidden_dim=256):
    """Deterministic init mirroring nn.Linear's U(-1/sqrt(fan_in), 1/sqrt(fan_in))."""
    def linear(k, fan_in, fan_out):
        kw, kb = jax.random.split(k)
        bound = 1.0 / jnp.sqrt(fan_in)
        w = jax.random.uniform(kw, (fan_in, fan_out), jnp.float32, -bound, bound)
        b = jax.random.uniform(kb, (1, fan_out), jnp.float32, -bound, bound)
        return w, b

    k1, k2, k3 = jax.random.split(key, 3)
    w1, b1 = linear(k1, latent_dim, hidden_dim)
    w2, b2 = linear(k2, hidden_dim, hidden_dim)
    w3, b3 = linear(k3, hidden_dim, latent_dim)
    return {"w1": w1, "b1": b1, "w2": w2, "b2": b2, "w3": w3, "b3": b3}


def reference_forward(z_in, p, *, compute_dtype=jnp.float32):
    """Pure-JAX reference that mirrors the kernel's dtype handling."""
    z = z_in.astype(compute_dtype)
    w1 = p["w1"].astype(compute_dtype)
    w2 = p["w2"].astype(compute_dtype)
    w3 = p["w3"].astype(compute_dtype)
    h = jnp.maximum(
        jnp.dot(z, w1, preferred_element_type=jnp.float32) + p["b1"], 0.0)
    h = jnp.maximum(
        jnp.dot(h.astype(compute_dtype), w2,
                preferred_element_type=jnp.float32) + p["b2"], 0.0)
    return jnp.dot(h.astype(compute_dtype), w3,
                   preferred_element_type=jnp.float32) + p["b3"]


if __name__ == "__main__":
    key = jax.random.PRNGKey(0)
    k_params, k_z1, k_z2 = jax.random.split(key, 3)

    latent_dim, hidden_dim = 128, 256
    params = init_params(k_params, latent_dim, hidden_dim)

    # Case 1: larger batch -> multi-step grid (2 x 256-row tiles), f32.
    z_big = jax.random.normal(k_z1, (512, latent_dim), jnp.float32)
    out = jax.block_until_ready(latent_solver_forward(z_big, params))
    ref = reference_forward(z_big, params)
    assert out.shape == z_big.shape
    assert jnp.allclose(out, ref, atol=1e-4, rtol=1e-4), "f32 mismatch (big)"

    # Case 2: small, non-multiple batch -> single grid step with padding, f32.
    z_small = jax.random.normal(k_z2, (10, latent_dim), jnp.float32)
    out_s = jax.block_until_ready(latent_solver_forward(z_small, params))
    ref_s = reference_forward(z_small, params)
    assert out_s.shape == z_small.shape
    assert jnp.allclose(out_s, ref_s, atol=1e-4, rtol=1e-4), "f32 mismatch (small)"

    # Case 3: bf16 MXU operands with f32 accumulation (fast MXU path).
    out_bf = jax.block_until_ready(
        latent_solver_forward(z_big, params, compute_dtype=jnp.bfloat16))
    ref_bf = reference_forward(z_big, params, compute_dtype=jnp.bfloat16)
    assert jnp.allclose(out_bf, ref_bf, atol=2e-2, rtol=2e-2), "bf16 mismatch"

    print("KERNEL_OK")
</pallas_src>

<mosaic_0001>
module attributes {stable_mosaic.version = 11 : i64} {
  func.func @_latent_solver_kernel(%arg0: i32, %arg1: memref<256x128xf32, #tpu.memory_space<vmem>>, %arg2: memref<128x256xf32, #tpu.memory_space<vmem>>, %arg3: memref<1x256xf32, #tpu.memory_space<vmem>>, %arg4: memref<256x256xf32, #tpu.memory_space<vmem>>, %arg5: memref<1x256xf32, #tpu.memory_space<vmem>>, %arg6: memref<256x128xf32, #tpu.memory_space<vmem>>, %arg7: memref<1x128xf32, #tpu.memory_space<vmem>>, %arg8: memref<256x128xf32, #tpu.memory_space<vmem>>, %arg9: memref<256x256xf32, #tpu.memory_space<vmem>>, %arg10: memref<256x256xf32, #tpu.memory_space<vmem>>) attributes {dimension_semantics = [#tpu.dimension_semantics<parallel>], iteration_bounds = array<i64: 2>, scalar_prefetch = 0 : i64, scratch_operands = 2 : i64, tpu.core_type = #tpu.core_type<tc>, window_params = [{transform_indices = @transform_0, window_bounds = array<i64: 256, 128>}, {pipeline_mode = #tpu.pipeline_mode<synchronous>, transform_indices = @transform_1, window_bounds = array<i64: 128, 256>}, {pipeline_mode = #tpu.pipeline_mode<synchronous>, transform_indices = @transform_2, window_bounds = array<i64: 1, 256>}, {pipeline_mode = #tpu.pipeline_mode<synchronous>, transform_indices = @transform_3, window_bounds = array<i64: 256, 256>}, {pipeline_mode = #tpu.pipeline_mode<synchronous>, transform_indices = @transform_4, window_bounds = array<i64: 1, 256>}, {pipeline_mode = #tpu.pipeline_mode<synchronous>, transform_indices = @transform_5, window_bounds = array<i64: 256, 128>}, {pipeline_mode = #tpu.pipeline_mode<synchronous>, transform_indices = @transform_6, window_bounds = array<i64: 1, 128>}, {transform_indices = @transform_7, window_bounds = array<i64: 256, 128>}]} {
    %c0 = arith.constant 0 : index
    %c0_0 = arith.constant 0 : index
    %0 = vector.load %arg1[%c0, %c0_0] : memref<256x128xf32, #tpu.memory_space<vmem>>, vector<256x128xf32>
    %c0_1 = arith.constant 0 : index
    %c0_2 = arith.constant 0 : index
    %1 = vector.load %arg2[%c0_1, %c0_2] : memref<128x256xf32, #tpu.memory_space<vmem>>, vector<128x256xf32>
    %cst = arith.constant dense<0.000000e+00> : vector<256x256xf32>
    %2 = tpu.matmul %0, %1, %cst {dimension_numbers = #tpu.dot_dimension_numbers<[1], [0], [0], [1], [0, 0, 1, 1], [], []>} : vector<256x128xf32>, vector<128x256xf32>, vector<256x256xf32> -> vector<256x256xf32>
    %c0_3 = arith.constant 0 : index
    %c0_4 = arith.constant 0 : index
    %3 = vector.load %arg3[%c0_3, %c0_4] : memref<1x256xf32, #tpu.memory_space<vmem>>, vector<1x256xf32>
    %4 = vector.broadcast %3 : vector<1x256xf32> to vector<256x256xf32>
    %5 = arith.addf %2, %4 : vector<256x256xf32>
    %cst_5 = arith.constant 0.000000e+00 : f32
    %6 = vector.broadcast %cst_5 : f32 to vector<256x256xf32>
    %7 = arith.maximumf %5, %6 : vector<256x256xf32>
    %c0_6 = arith.constant 0 : index
    %c0_7 = arith.constant 0 : index
    %8 = vector.load %arg9[%c0_6, %c0_7] : memref<256x256xf32, #tpu.memory_space<vmem>>, vector<256x256xf32>
    tpu.vector_store %arg9[%c0_6, %c0_7], %7 {strides = array<i32>} : memref<256x256xf32, #tpu.memory_space<vmem>>, vector<256x256xf32>,
    %c0_8 = arith.constant 0 : index
    %c0_9 = arith.constant 0 : index
    %9 = vector.load %arg9[%c0_8, %c0_9] : memref<256x256xf32, #tpu.memory_space<vmem>>, vector<256x256xf32>
    %c0_10 = arith.constant 0 : index
    %c0_11 = arith.constant 0 : index
    %10 = vector.load %arg4[%c0_10, %c0_11] : memref<256x256xf32, #tpu.memory_space<vmem>>, vector<256x256xf32>
    %cst_12 = arith.constant dense<0.000000e+00> : vector<256x256xf32>
    %11 = tpu.matmul %9, %10, %cst_12 {dimension_numbers = #tpu.dot_dimension_numbers<[1], [0], [0], [1], [0, 0, 1, 1], [], []>} : vector<256x256xf32>, vector<256x256xf32>, vector<256x256xf32> -> vector<256x256xf32>
    %c0_13 = arith.constant 0 : index
    %c0_14 = arith.constant 0 : index
    %12 = vector.load %arg5[%c0_13, %c0_14] : memref<1x256xf32, #tpu.memory_space<vmem>>, vector<1x256xf32>
    %13 = vector.broadcast %12 : vector<1x256xf32> to vector<256x256xf32>
    %14 = arith.addf %11, %13 : vector<256x256xf32>
    %cst_15 = arith.constant 0.000000e+00 : f32
    %15 = vector.broadcast %cst_15 : f32 to vector<256x256xf32>
    %16 = arith.maximumf %14, %15 : vector<256x256xf32>
    %c0_16 = arith.constant 0 : index
    %c0_17 = arith.constant 0 : index
    %17 = vector.load %arg10[%c0_16, %c0_17] : memref<256x256xf32, #tpu.memory_space<vmem>>, vector<256x256xf32>
    tpu.vector_store %arg10[%c0_16, %c0_17], %16 {strides = array<i32>} : memref<256x256xf32, #tpu.memory_space<vmem>>, vector<256x256xf32>,
    %c0_18 = arith.constant 0 : index
    %c0_19 = arith.constant 0 : index
    %18 = vector.load %arg10[%c0_18, %c0_19] : memref<256x256xf32, #tpu.memory_space<vmem>>, vector<256x256xf32>
    %c0_20 = arith.constant 0 : index
    %c0_21 = arith.constant 0 : index
    %19 = vector.load %arg6[%c0_20, %c0_21] : memref<256x128xf32, #tpu.memory_space<vmem>>, vector<256x128xf32>
    %cst_22 = arith.constant dense<0.000000e+00> : vector<256x128xf32>
    %20 = tpu.matmul %18, %19, %cst_22 {dimension_numbers = #tpu.dot_dimension_numbers<[1], [0], [0], [1], [0, 0, 1, 1], [], []>} : vector<256x256xf32>, vector<256x128xf32>, vector<256x128xf32> -> vector<256x128xf32>
    %c0_23 = arith.constant 0 : index
    %c0_24 = arith.constant 0 : index
    %21 = vector.load %arg7[%c0_23, %c0_24] : memref<1x128xf32, #tpu.memory_space<vmem>>, vector<1x128xf32>
    %22 = vector.broadcast %21 : vector<1x128xf32> to vector<256x128xf32>
    %23 = arith.addf %20, %22 : vector<256x128xf32>
    %c0_25 = arith.constant 0 : index
    %c0_26 = arith.constant 0 : index
    %24 = vector.load %arg8[%c0_25, %c0_26] : memref<256x128xf32, #tpu.memory_space<vmem>>, vector<256x128xf32>
    tpu.vector_store %arg8[%c0_25, %c0_26], %23 {strides = array<i32>} : memref<256x128xf32, #tpu.memory_space<vmem>>, vector<256x128xf32>,
    return
  }
  func.func @transform_0(%arg0: i32) -> (i32, i32) {
    %c0_i32 = arith.constant 0 : i32
    %c0_i32_0 = arith.constant 0 : i32
    return %arg0, %c0_i32 : i32, i32
  }
  func.func @transform_1(%arg0: i32) -> (i32, i32) {
    %c0_i32 = arith.constant 0 : i32
    %c0_i32_0 = arith.constant 0 : i32
    %c0_i32_1 = arith.constant 0 : i32
    return %c0_i32, %c0_i32_0 : i32, i32
  }
  func.func @transform_2(%arg0: i32) -> (i32, i32) {
    %c0_i32 = arith.constant 0 : i32
    %c0_i32_0 = arith.constant 0 : i32
    %c0_i32_1 = arith.constant 0 : i32
    return %c0_i32, %c0_i32_0 : i32, i32
  }
  func.func @transform_3(%arg0: i32) -> (i32, i32) {
    %c0_i32 = arith.constant 0 : i32
    %c0_i32_0 = arith.constant 0 : i32
    %c0_i32_1 = arith.constant 0 : i32
    return %c0_i32, %c0_i32_0 : i32, i32
  }
  func.func @transform_4(%arg0: i32) -> (i32, i32) {
    %c0_i32 = arith.constant 0 : i32
    %c0_i32_0 = arith.constant 0 : i32
    %c0_i32_1 = arith.constant 0 : i32
    return %c0_i32, %c0_i32_0 : i32, i32
  }
  func.func @transform_5(%arg0: i32) -> (i32, i32) {
    %c0_i32 = arith.constant 0 : i32
    %c0_i32_0 = arith.constant 0 : i32
    %c0_i32_1 = arith.constant 0 : i32
    return %c0_i32, %c0_i32_0 : i32, i32
  }
  func.func @transform_6(%arg0: i32) -> (i32, i32) {
    %c0_i32 = arith.constant 0 : i32
    %c0_i32_0 = arith.constant 0 : i32
    %c0_i32_1 = arith.constant 0 : i32
    return %c0_i32, %c0_i32_0 : i32, i32
  }
  func.func @transform_7(%arg0: i32) -> (i32, i32) {
    %c0_i32 = arith.constant 0 : i32
    %c0_i32_0 = arith.constant 0 : i32
    return %arg0, %c0_i32 : i32, i32
  }
}

</mosaic_0001>

<llo_original>
// kernel: tpu_custom_call.1
$region0: #{tpu_custom_call.1}
  #allocation0 [shape = 'u32[]', space=smem, size = 0x4, offset = 0x4, fixed_abs, tag = 'smem constant byte address 0x4 - core index']
  #allocation1 [shape = 'u32[144,128]{1,0:T(1,128)}', space=vmem, size = 0x12000, scoped, tag = 'internal scratch']
  #allocation2 [shape = 'f32[256,256]{1,0:T(8,128)}', space=vmem, size = 0x40000, scoped, tag = 'scratch operand']
  #allocation3 [shape = 'f32[256,256]{1,0:T(8,128)}', space=vmem, size = 0x40000, scoped, tag = 'scratch operand']
  %s0 = inlined_call_operand.hbm [shape: f32[512,128], index: 0, kind: input, shape index: {}]
  %s1 = inlined_call_operand.hbm [shape: f32[128,256], index: 1, kind: input, shape index: {}]
  %s2 = inlined_call_operand.vmem [shape: f32[1,256], index: 2, kind: input, shape index: {}]
  %s3 = inlined_call_operand.hbm [shape: f32[256,256], index: 3, kind: input, shape index: {}]
  %s4 = inlined_call_operand.vmem [shape: f32[1,256], index: 4, kind: input, shape index: {}]
  %s5 = inlined_call_operand.hbm [shape: f32[256,128], index: 5, kind: input, shape index: {}]
  %s6 = inlined_call_operand.vmem [shape: f32[1,128], index: 6, kind: input, shape index: {}]
  %s7 = inlined_call_operand.hbm [shape: f32[512,128], index: 7, kind: output, shape index: {}]
  %s8 = sld [smem:[#allocation0]]
  $region77: #{tpu_custom_call.1} parent=0
    _
  %s10 = ssub.s32 1, %s8
  %s11 = scalar_select 0, %s10, %s8
  $region1: #{tpu_custom_call.1} parent=0
    #allocation4 [shape = 'u8[262144]{0}', space=vmem, size = 0x40000, scoped, tag = 'input window, operand 0']
    #allocation5 [shape = 's32[2]{0}', space=sflag, size = 0x8, scoped, tag = 'scoped memory for tpu_custom_call.1']
    #allocation6 [shape = 's32[2]{0}', space=sflag, size = 0x8, scoped, tag = 'scoped memory for tpu_custom_call.1']
    #allocation7 [shape = 'u8[131072]{0}', space=vmem, size = 0x20000, scoped, tag = 'input window, operand 1, single buffered']
    #allocation8 [shape = 's32[1]{0}', space=sflag, size = 0x4, scoped, tag = 'scoped memory for tpu_custom_call.1']
    #allocation9 [shape = 'u8[262144]{0}', space=vmem, size = 0x40000, scoped, tag = 'input window, operand 3, single buffered']
    #allocation10 [shape = 'u8[131072]{0}', space=vmem, size = 0x20000, scoped, tag = 'input window, operand 5, single buffered']
    #allocation11 [shape = 's32[1]{0}', space=sflag, size = 0x4, scoped, tag = 'scoped memory for tpu_custom_call.1']
    #allocation12 [shape = 'u8[262144]{0}', space=vmem, size = 0x40000, scoped, tag = 'output window, operand 0']
    %12 = vsyncpa [#allocation5], 0
    %s13 = scalar_lea.sflag [#allocation5], 1
    %14 = vsyncpa %s13, 0
    %15 = vsyncpa [#allocation8], 0
    %16 = vsyncpa [#allocation11], 0
    %17 = vsyncpa [#allocation6], 0
    %s18 = scalar_lea.sflag [#allocation6], 1
    %19 = vsyncpa %s18, 0
    loop: start=0, step=1, limit=4
    $region2: #{tpu_custom_call.1} parent=1 // loop_pre_header
      _
    $region3: #{tpu_custom_call.1} parent=1 // loop_header
      %s21 = sphi 0, %s25
      %p22 = scmp.ge.s32.totalorder %s21, 4
      %s31 = sphi 0, %s33
      %s34 = sphi 0, %s31
      %s35 = sphi 0, %s34
      %s51 = sphi 0, %s35
      %s55 = sphi 0, %s55
      %s57 = sphi 0, %s55
      %s58 = sphi 0, %s57
      %s72 = sphi 0, %s58
      %s76 = sphi 0, %s76
      %s78 = sphi 0, %s76
      %s79 = sphi 0, %s78
      %s93 = sphi 0, %s79
      %s97 = sphi 0, %s97
      %s99 = sphi 0, %s97
      %s100 = sphi 0, %s99
      %s114 = sphi 0, %s100
      %s118 = sphi 0, %s118
      %s120 = sphi 0, %s118
      %s121 = sphi 0, %s120
      %s135 = sphi 0, %s121
      %s139 = sphi 0, %s139
      %s141 = sphi 0, %s139
      %s142 = sphi 0, %s141
      %s156 = sphi 0, %s142
      %s160 = sphi 0, %s160
      %s162 = sphi 0, %s160
      %s163 = sphi 0, %s162
      %s177 = sphi 0, %s163
      %s183 = sphi 0, %s185
      %s186 = sphi 0, %s183
      %s187 = sphi 0, %s186
      %s203 = sphi 0, %s187
    $region4: #{tpu_custom_call.1} parent=1 // loop_header_branch
      %24 = sbr.rel (%p22) target = $region8
    $region5: #{tpu_custom_call.1} parent=1 // loop_body
      %s26 = ssub.s32 %s21, 1
      %s27 = ssub.s32 %s21, 2
      %s28 = sadd.s32 %s21, 1
      %s29 = ssub.s32 %s21, %s28
      %p30 = scmp.eq.s32.totalorder %s29, 0
      %s32 = sadd.s32 %s31, 1
      %s33 = scalar_select %p30, %s31, %s32
      %p36 = pneg %p30
      %p37 = scmp.eq.s32.totalorder %s21, 1
      %p38 = por %p36, %p37
      %p39 = scmp.ne.s32.totalorder %s31, %s34
      %p40 = scmp.eq.s32.totalorder %s21, 0
      %p41 = por %p39, %p40
      %p42 = scmp.ne.s32.totalorder %s31, %s34
      %p43 = scmp.eq.s32.totalorder %s26, 1
      %p44 = por %p42, %p43
      %p45 = scmp.ne.s32.totalorder %s34, %s35
      %p46 = scmp.eq.s32.totalorder %s26, 0
      %p47 = por %p45, %p46
      %p48 = scmp.ne.s32.totalorder %s34, %s35
      %p49 = scmp.eq.s32.totalorder %s27, 1
      %p50 = por %p48, %p49
      %p52 = scmp.ne.s32.totalorder %s35, %s51
      %p53 = scmp.eq.s32.totalorder %s27, 0
      %p54 = por %p52, %p53
      %s56 = sadd.s32 %s55, 1
      %p59 = scmp.eq.s32.totalorder %s21, 1
      %p60 = scmp.ne.s32.totalorder %s55, %s57
      %p61 = scmp.eq.s32.totalorder %s21, 0
      %p62 = por %p60, %p61
      %p63 = scmp.ne.s32.totalorder %s55, %s57
      %p64 = scmp.eq.s32.totalorder %s26, 1
      %p65 = por %p63, %p64
      %p66 = scmp.ne.s32.totalorder %s57, %s58
      %p67 = scmp.eq.s32.totalorder %s26, 0
      %p68 = por %p66, %p67
      %p69 = scmp.ne.s32.totalorder %s57, %s58
      %p70 = scmp.eq.s32.totalorder %s27, 1
      %p71 = por %p69, %p70
      %p73 = scmp.ne.s32.totalorder %s58, %s72
      %p74 = scmp.eq.s32.totalorder %s27, 0
      %p75 = por %p73, %p74
      %s77 = sadd.s32 %s76, 1
      %p80 = scmp.eq.s32.totalorder %s21, 1
      %p81 = scmp.ne.s32.totalorder %s76, %s78
      %p82 = scmp.eq.s32.totalorder %s21, 0
      %p83 = por %p81, %p82
      %p84 = scmp.ne.s32.totalorder %s76, %s78
      %p85 = scmp.eq.s32.totalorder %s26, 1
      %p86 = por %p84, %p85
      %p87 = scmp.ne.s32.totalorder %s78, %s79
      %p88 = scmp.eq.s32.totalorder %s26, 0
      %p89 = por %p87, %p88
      %p90 = scmp.ne.s32.totalorder %s78, %s79
      %p91 = scmp.eq.s32.totalorder %s27, 1
      %p92 = por %p90, %p91
      %p94 = scmp.ne.s32.totalorder %s79, %s93
      %p95 = scmp.eq.s32.totalorder %s27, 0
      %p96 = por %p94, %p95
      %s98 = sadd.s32 %s97, 1
      %p101 = scmp.eq.s32.totalorder %s21, 1
      %p102 = scmp.ne.s32.totalorder %s97, %s99
      %p103 = scmp.eq.s32.totalorder %s21, 0
      %p104 = por %p102, %p103
      %p105 = scmp.ne.s32.totalorder %s97, %s99
      %p106 = scmp.eq.s32.totalorder %s26, 1
      %p107 = por %p105, %p106
      %p108 = scmp.ne.s32.totalorder %s99, %s100
      %p109 = scmp.eq.s32.totalorder %s26, 0
      %p110 = por %p108, %p109
      %p111 = scmp.ne.s32.totalorder %s99, %s100
      %p112 = scmp.eq.s32.totalorder %s27, 1
      %p113 = por %p111, %p112
      %p115 = scmp.ne.s32.totalorder %s100, %s114
      %p116 = scmp.eq.s32.totalorder %s27, 0
      %p117 = por %p115, %p116
      %s119 = sadd.s32 %s118, 1
      %p122 = scmp.eq.s32.totalorder %s21, 1
      %p123 = scmp.ne.s32.totalorder %s118, %s120
      %p124 = scmp.eq.s32.totalorder %s21, 0
      %p125 = por %p123, %p124
      %p126 = scmp.ne.s32.totalorder %s118, %s120
      %p127 = scmp.eq.s32.totalorder %s26, 1
      %p128 = por %p126, %p127
      %p129 = scmp.ne.s32.totalorder %s120, %s121
      %p130 = scmp.eq.s32.totalorder %s26, 0
      %p131 = por %p129, %p130
      %p132 = scmp.ne.s32.totalorder %s120, %s121
      %p133 = scmp.eq.s32.totalorder %s27, 1
      %p134 = por %p132, %p133
      %p136 = scmp.ne.s32.totalorder %s121, %s135
      %p137 = scmp.eq.s32.totalorder %s27, 0
      %p138 = por %p136, %p137
      %s140 = sadd.s32 %s139, 1
      %p143 = scmp.eq.s32.totalorder %s21, 1
      %p144 = scmp.ne.s32.totalorder %s139, %s141
      %p145 = scmp.eq.s32.totalorder %s21, 0
      %p146 = por %p144, %p145
      %p147 = scmp.ne.s32.totalorder %s139, %s141
      %p148 = scmp.eq.s32.totalorder %s26, 1
      %p149 = por %p147, %p148
      %p150 = scmp.ne.s32.totalorder %s141, %s142
      %p151 = scmp.eq.s32.totalorder %s26, 0
      %p152 = por %p150, %p151
      %p153 = scmp.ne.s32.totalorder %s141, %s142
      %p154 = scmp.eq.s32.totalorder %s27, 1
      %p155 = por %p153, %p154
      %p157 = scmp.ne.s32.totalorder %s142, %s156
      %p158 = scmp.eq.s32.totalorder %s27, 0
      %p159 = por %p157, %p158
      %s161 = sadd.s32 %s160, 1
      %p164 = scmp.eq.s32.totalorder %s21, 1
      %p165 = scmp.ne.s32.totalorder %s160, %s162
      %p166 = scmp.eq.s32.totalorder %s21, 0
      %p167 = por %p165, %p166
      %p168 = scmp.ne.s32.totalorder %s160, %s162
      %p169 = scmp.eq.s32.totalorder %s26, 1
      %p170 = por %p168, %p169
      %p171 = scmp.ne.s32.totalorder %s162, %s163
      %p172 = scmp.eq.s32.totalorder %s26, 0
      %p173 = por %p171, %p172
      %p174 = scmp.ne.s32.totalorder %s162, %s163
      %p175 = scmp.eq.s32.totalorder %s27, 1
      %p176 = por %p174, %p175
      %p178 = scmp.ne.s32.totalorder %s163, %s177
      %p179 = scmp.eq.s32.totalorder %s27, 0
      %p180 = por %p178, %p179
      %s181 = ssub.s32 %s21, %s28
      %p182 = scmp.eq.s32.totalorder %s181, 0
      %s184 = sadd.s32 %s183, 1
      %s185 = scalar_select %p182, %s183, %s184
      %p188 = pneg %p182
      %p189 = scmp.eq.s32.totalorder %s21, 1
      %p190 = por %p188, %p189
      %p191 = scmp.ne.s32.totalorder %s183, %s186
      %p192 = scmp.eq.s32.totalorder %s21, 0
      %p193 = por %p191, %p192
      %p194 = scmp.ne.s32.totalorder %s183, %s186
      %p195 = scmp.eq.s32.totalorder %s26, 1
      %p196 = por %p194, %p195
      %p197 = scmp.ne.s32.totalorder %s186, %s187
      %p198 = scmp.eq.s32.totalorder %s26, 0
      %p199 = por %p197, %p198
      %p200 = scmp.ne.s32.totalorder %s186, %s187
      %p201 = scmp.eq.s32.totalorder %s27, 1
      %p202 = por %p200, %p201
      %p204 = scmp.ne.s32.totalorder %s187, %s203
      %p205 = scmp.eq.s32.totalorder %s27, 0
      %p206 = por %p204, %p205
      %p207 = scmp.le.s32.totalorder 1, %s21
      %p208 = scmp.lt.s32.totalorder %s21, 3
      %p209 = pnand %p207, %p208
      %p210 = pneg %p209
      // Predicated region
      $region9: #{tpu_custom_call.1} parent=5 // pred_check
        _
      $region10: #{tpu_custom_call.1} parent=5 // pred_check_branch
        %212 = sbr.rel (%p209) target = $region12
      $region11: #{tpu_custom_call.1} parent=5 // pred_region
        %s213 = ssub.s32 %s21, 1
        // Predicated region
        $region13: #{tpu_custom_call.1} parent=11 // pred_check
          %p214 = pneg %p68
        $region14: #{tpu_custom_call.1} parent=11 // pred_check_branch
          %216 = sbr.rel (%p214) target = $region16
        $region15: #{tpu_custom_call.1} parent=11 // pred_region
          %s218 = ssub.s32 4096, 4096
          %219 = vsyncadd [#allocation8], %s218
          %s220 = sshll.u32 [#allocation7], 4
          %s221 = int_to_ptr.vmem [resolvable:$true] %s220
          %226 = dma.hbm_to_vmem [thread:$0]  %s1, 4096, %s221, [#allocation8], 256, 256, 16
        $region16: #{tpu_custom_call.1} parent=11 // pred_fallthru
          _
        // Predicated region
        $region17: #{tpu_custom_call.1} parent=11 // pred_check
          %p227 = pneg %p89
        $region18: #{tpu_custom_call.1} parent=11 // pred_check_branch
          %229 = sbr.rel (%p227) target = $region20
        $region19: #{tpu_custom_call.1} parent=11 // pred_region
          _
        $region20: #{tpu_custom_call.1} parent=11 // pred_fallthru
          _
        // Predicated region
        $region21: #{tpu_custom_call.1} parent=11 // pred_check
          %p230 = pneg %p110
        $region22: #{tpu_custom_call.1} parent=11 // pred_check_branch
          %232 = sbr.rel (%p230) target = $region24
        $region23: #{tpu_custom_call.1} parent=11 // pred_region
          %s234 = ssub.s32 8192, 8192
          %235 = vsyncadd [#allocation8], %s234
          %s236 = sshll.u32 [#allocation9], 4
          %s237 = int_to_ptr.vmem [resolvable:$true] %s236
          %242 = dma.hbm_to_vmem [thread:$0]  %s3, 8192, %s237, [#allocation8], 256, 256, 16
        $region24: #{tpu_custom_call.1} parent=11 // pred_fallthru
          _
        // Predicated region
        $region25: #{tpu_custom_call.1} parent=11 // pred_check
          %p243 = pneg %p131
        $region26: #{tpu_custom_call.1} parent=11 // pred_check_branch
          %245 = sbr.rel (%p243) target = $region28
        $region27: #{tpu_custom_call.1} parent=11 // pred_region
          _
        $region28: #{tpu_custom_call.1} parent=11 // pred_fallthru
          _
        // Predicated region
        $region29: #{tpu_custom_call.1} parent=11 // pred_check
          %p246 = pneg %p152
        $region30: #{tpu_custom_call.1} parent=11 // pred_check_branch
          %248 = sbr.rel (%p246) target = $region32
        $region31: #{tpu_custom_call.1} parent=11 // pred_region
          %s250 = ssub.s32 4096, 4096
          %251 = vsyncadd [#allocation11], %s250
          %s252 = sshll.u32 [#allocation10], 4
          %s253 = int_to_ptr.vmem [resolvable:$true] %s252
          %258 = dma.hbm_to_vmem [thread:$0]  %s5, 4096, %s253, [#allocation11], 128, 128, 8
        $region32: #{tpu_custom_call.1} parent=11 // pred_fallthru
          _
        // Predicated region
        $region33: #{tpu_custom_call.1} parent=11 // pred_check
          %p259 = pneg %p173
        $region34: #{tpu_custom_call.1} parent=11 // pred_check_branch
          %261 = sbr.rel (%p259) target = $region36
        $region35: #{tpu_custom_call.1} parent=11 // pred_region
          _
        $region36: #{tpu_custom_call.1} parent=11 // pred_fallthru
          _
      $region12: #{tpu_custom_call.1} parent=5 // pred_fallthru
        _
      %p262 = scmp.lt.s32.totalorder %s21, 2
      // Predicated region
      $region37: #{tpu_custom_call.1} parent=5 // pred_check
        %p263 = pneg %p262
      $region38: #{tpu_custom_call.1} parent=5 // pred_check_branch
        %265 = sbr.rel (%p263) target = $region40
      $region39: #{tpu_custom_call.1} parent=5 // pred_region
        // Predicated region
        $region41: #{tpu_custom_call.1} parent=39 // pred_check
          %p266 = pneg %p41
        $region42: #{tpu_custom_call.1} parent=39 // pred_check_branch
          %268 = sbr.rel (%p266) target = $region44
        $region43: #{tpu_custom_call.1} parent=39 // pred_region
          %s269 = sand.u32 %s31, 1
          %s270 = scalar_lea.sflag [#allocation5], %s269
          %s271 = sand.u32 %s31, 1
          %s272 = smul.addr %s271, 256
          %s273 = scalar_lea.vmem [#allocation4], %s272
          %s274 = smul.u32 32, %s21
          %s276 = ssub.s32 4096, 4096
          %277 = vsyncadd %s270, %s276
          %s278 = smul.addr %s274, 128
          %s279 = scalar_lea.hbm %s0, %s278
          %s280 = sshll.u32 %s273, 4
          %s281 = int_to_ptr.vmem [resolvable:$true] %s280
          %286 = dma.hbm_to_vmem [thread:$0]  %s279, 4096, %s281, %s270, 128, 128, 8
        $region44: #{tpu_custom_call.1} parent=39 // pred_fallthru
          _
      $region40: #{tpu_custom_call.1} parent=5 // pred_fallthru
        _
      %p287 = scmp.le.s32.totalorder 1, %s21
      %p288 = scmp.lt.s32.totalorder %s21, 3
      %p289 = pnand %p287, %p288
      %p290 = pneg %p289
      // Predicated region
      $region45: #{tpu_custom_call.1} parent=5 // pred_check
        _
      $region46: #{tpu_custom_call.1} parent=5 // pred_check_branch
        %292 = sbr.rel (%p289) target = $region48
      $region47: #{tpu_custom_call.1} parent=5 // pred_region
        %s293 = ssub.s32 %s21, 1
        %s294 = sand.u32 %s34, 1
        %s295 = scalar_lea.sflag [#allocation5], %s294
        %s296 = sand.u32 %s34, 1
        %s297 = smul.addr %s296, 256
        %s298 = scalar_lea.vmem [#allocation4], %s297
        // Predicated region
        $region49: #{tpu_custom_call.1} parent=47 // pred_check
          %p299 = pneg %p47
        $region50: #{tpu_custom_call.1} parent=47 // pred_check_branch
          %301 = sbr.rel (%p299) target = $region52
        $region51: #{tpu_custom_call.1} parent=47 // pred_region
          %302 = dma.done %s295, 4096
        $region52: #{tpu_custom_call.1} parent=47 // pred_fallthru
          _
        // Predicated region
        $region53: #{tpu_custom_call.1} parent=47 // pred_check
          %p303 = pneg %p68
        $region54: #{tpu_custom_call.1} parent=47 // pred_check_branch
          %305 = sbr.rel (%p303) target = $region56
        $region55: #{tpu_custom_call.1} parent=47 // pred_region
          %306 = dma.done [#allocation8], 4096
        $region56: #{tpu_custom_call.1} parent=47 // pred_fallthru
          _
        // Predicated region
        $region57: #{tpu_custom_call.1} parent=47 // pred_check
          %p307 = pneg %p110
        $region58: #{tpu_custom_call.1} parent=47 // pred_check_branch
          %309 = sbr.rel (%p307) target = $region60
        $region59: #{tpu_custom_call.1} parent=47 // pred_region
          %310 = dma.done [#allocation8], 8192
        $region60: #{tpu_custom_call.1} parent=47 // pred_fallthru
          _
        // Predicated region
        $region61: #{tpu_custom_call.1} parent=47 // pred_check
          %p311 = pneg %p152
        $region62: #{tpu_custom_call.1} parent=47 // pred_check_branch
          %313 = sbr.rel (%p311) target = $region64
        $region63: #{tpu_custom_call.1} parent=47 // pred_region
          %314 = dma.done [#allocation11], 4096
        $region64: #{tpu_custom_call.1} parent=47 // pred_fallthru
          _
        %s315 = sand.u32 %s34, 1
        %s316 = scalar_lea.sflag [#allocation5], %s315
        %s317 = sand.u32 %s34, 1
        %s318 = smul.addr %s317, 256
        %s319 = scalar_lea.vmem [#allocation4], %s318
        %p320 = pneg %p47
        %p321 = pneg %p44
        %p322 = pneg %p68
        %p323 = pneg %p65
        %p324 = pneg %p89
        %p325 = pneg %p86
        %p326 = pneg %p110
        %p327 = pneg %p107
        %p328 = pneg %p131
        %p329 = pneg %p128
        %p330 = pneg %p152
        %p331 = pneg %p149
        %p332 = pneg %p173
        %p333 = pneg %p170
        %p334 = pneg %p199
        %p335 = pneg %p196
        %s336 = sand.u32 %s186, 1
        %s337 = scalar_lea.sflag [#allocation6], %s336
        %s338 = sand.u32 %s186, 1
        %s339 = smul.addr %s338, 256
        %s340 = scalar_lea.vmem [#allocation12], %s339
        %s341 = smul.u32 32, %s26
        %s342 = smul.u32 32, %s26
        %v343 = vld [vmem:[%s298] sm:$0xff]
        %v344 = vld [vmem:[%s298 + $0x8] sm:$0xff]
        %v345 = vld [vmem:[%s298 + $0x10] sm:$0xff]
        %v346 = vld [vmem:[%s298 + $0x18] sm:$0xff]
        %v347 = vld [vmem:[%s298 + $0x20] sm:$0xff]
        %v348 = vld [vmem:[%s298 + $0x28] sm:$0xff]
        %v349 = vld [vmem:[%s298 + $0x30] sm:$0xff]
        %v350 = vld [vmem:[%s298 + $0x38] sm:$0xff]
        %v351 = vld [vmem:[%s298 + $0x40] sm:$0xff]
        %v352 = vld [vmem:[%s298 + $0x48] sm:$0xff]
        %v353 = vld [vmem:[%s298 + $0x50] sm:$0xff]
        %v354 = vld [vmem:[%s298 + $0x58] sm:$0xff]
        %v355 = vld [vmem:[%s298 + $0x60] sm:$0xff]
        %v356 = vld [vmem:[%s298 + $0x68] sm:$0xff]
        %v357 = vld [vmem:[%s298 + $0x70] sm:$0xff]
        %v358 = vld [vmem:[%s298 + $0x78] sm:$0xff]
        %v359 = vld [vmem:[%s298 + $0x80] sm:$0xff]
        %v360 = vld [vmem:[%s298 + $0x88] sm:$0xff]
        %v361 = vld [vmem:[%s298 + $0x90] sm:$0xff]
        %v362 = vld [vmem:[%s298 + $0x98] sm:$0xff]
        %v363 = vld [vmem:[%s298 + $0xa0] sm:$0xff]
        %v364 = vld [vmem:[%s298 + $0xa8] sm:$0xff]
        %v365 = vld [vmem:[%s298 + $0xb0] sm:$0xff]
        %v366 = vld [vmem:[%s298 + $0xb8] sm:$0xff]
        %v367 = vld [vmem:[%s298 + $0xc0] sm:$0xff]
        %v368 = vld [vmem:[%s298 + $0xc8] sm:$0xff]
        %v369 = vld [vmem:[%s298 + $0xd0] sm:$0xff]
        %v370 = vld [vmem:[%s298 + $0xd8] sm:$0xff]
        %v371 = vld [vmem:[%s298 + $0xe0] sm:$0xff]
        %v372 = vld [vmem:[%s298 + $0xe8] sm:$0xff]
        %v373 = vld [vmem:[%s298 + $0xf0] sm:$0xff]
        %v374 = vld [vmem:[%s298 + $0xf8] sm:$0xff]
        %v375 = vld [vmem:[#allocation7] sm:$0xff]
        %v376 = vld [vmem:[#allocation7 + $0x8] sm:$0xff]
        %v377 = vld [vmem:[#allocation7 + $0x10] sm:$0xff]
        %v378 = vld [vmem:[#allocation7 + $0x18] sm:$0xff]
        %v379 = vld [vmem:[#allocation7 + $0x20] sm:$0xff]
        %v380 = vld [vmem:[#allocation7 + $0x28] sm:$0xff]
        %v381 = vld [vmem:[#allocation7 + $0x30] sm:$0xff]
        %v382 = vld [vmem:[#allocation7 + $0x38] sm:$0xff]
        %v383 = vld [vmem:[#allocation7 + $0x40] sm:$0xff]
        %v384 = vld [vmem:[#allocation7 + $0x48] sm:$0xff]
        %v385 = vld [vmem:[#allocation7 + $0x50] sm:$0xff]
        %v386 = vld [vmem:[#allocation7 + $0x58] sm:$0xff]
        %v387 = vld [vmem:[#allocation7 + $0x60] sm:$0xff]
        %v388 = vld [vmem:[#allocation7 + $0x68] sm:$0xff]
        %v389 = vld [vmem:[#allocation7 + $0x70] sm:$0xff]
        %v390 = vld [vmem:[#allocation7 + $0x78] sm:$0xff]
        %v391 = vld [vmem:[#allocation7 + $0x80] sm:$0xff]
        %v392 = vld [vmem:[#allocation7 + $0x88] sm:$0xff]
        %v393 = vld [vmem:[#allocation7 + $0x90] sm:$0xff]
        %v394 = vld [vmem:[#allocation7 + $0x98] sm:$0xff]
        %v395 = vld [vmem:[#allocation7 + $0xa0] sm:$0xff]
        %v396 = vld [vmem:[#allocation7 + $0xa8] sm:$0xff]
        %v397 = vld [vmem:[#allocation7 + $0xb0] sm:$0xff]
        %v398 = vld [vmem:[#allocation7 + $0xb8] sm:$0xff]
        %v399 = vld [vmem:[#allocation7 + $0xc0] sm:$0xff]
        %v400 = vld [vmem:[#allocation7 + $0xc8] sm:$0xff]
        %v401 = vld [vmem:[#allocation7 + $0xd0] sm:$0xff]
        %v402 = vld [vmem:[#allocation7 + $0xd8] sm:$0xff]
        %v403 = vld [vmem:[#allocation7 + $0xe0] sm:$0xff]
        %v404 = vld [vmem:[#allocation7 + $0xe8] sm:$0xff]
        %v405 = vld [vmem:[#allocation7 + $0xf0] sm:$0xff]
        %v406 = vld [vmem:[#allocation7 + $0xf8] sm:$0xff]
        %v407 = vld [vmem:[%s2] sm:$0x3]
        %v409 = vlaneseq
        %v410 = vshrl.u32 %v409, 7
        %v411 = vsub.s32 0, %v410
        %v412 = vrot.slane %v407, %v411
        %v413 = vlaneseq
        %v414 = vshrl.u32 %v413, 7
        %v415 = vsub.s32 1, %v414
        %v416 = vrot.slane %v407, %v415
        %419 = vmatprep.subr.mxu0 %v376
        %420 = vmatpush1.msra.mxu0 %v375
        %421 = vmatprep.subr.mxu0 %v378
        %422 = vmatpush1.msra.mxu0 %v377
        %423 = vmatprep.subr.mxu0 %v380
        %424 = vmatpush1.msra.mxu0 %v379
        %425 = vmatprep.subr.mxu0 %v382
        %426 = vmatpush1.msra.mxu0 %v381
        %427 = vmatprep.subr.mxu0 %v384
        %428 = vmatpush1.msra.mxu0 %v383
        %429 = vmatprep.subr.mxu0 %v386
        %430 = vmatpush1.msra.mxu0 %v385
        %431 = vmatprep.subr.mxu0 %v388
        %432 = vmatpush1.msra.mxu0 %v387
        %433 = vmatprep.subr.mxu0 %v390
        %434 = vmatpush1.msra.mxu0 %v389
        %435 = vmatprep.subr.mxu0 %v392
        %436 = vmatpush1.msra.mxu0 %v391
        %437 = vmatprep.subr.mxu0 %v394
        %438 = vmatpush1.msra.mxu0 %v393
        %439 = vmatprep.subr.mxu0 %v396
        %440 = vmatpush1.msra.mxu0 %v395
        %441 = vmatprep.subr.mxu0 %v398
        %442 = vmatpush1.msra.mxu0 %v397
        %443 = vmatprep.subr.mxu0 %v400
        %444 = vmatpush1.msra.mxu0 %v399
        %445 = vmatprep.subr.mxu0 %v402
        %446 = vmatpush1.msra.mxu0 %v401
        %447 = vmatprep.subr.mxu0 %v404
        %448 = vmatpush1.msra.mxu0 %v403
        %449 = vmatprep.subr.mxu0 %v406
        %450 = vmatpush1.msra.mxu0 %v405
        %451 = vmatprep.subr.mxu0 0.0
        %452 = vmatpush1.msra.mxu0 0.0
        %453 = vmatprep.subr.mxu0 0.0
        %454 = vmatpush1.msra.mxu0 0.0
        %455 = vmatprep.subr.mxu0 0.0
        %456 = vmatpush1.msra.mxu0 0.0
        %457 = vmatprep.subr.mxu0 0.0
        %458 = vmatpush1.msra.mxu0 0.0
        %459 = vmatprep.subr.mxu0 0.0
        %460 = vmatpush1.msra.mxu0 0.0
        %461 = vmatprep.subr.mxu0 0.0
        %462 = vmatpush1.msra.mxu0 0.0
        %463 = vmatprep.subr.mxu0 0.0
        %464 = vmatpush1.msra.mxu0 0.0
        %465 = vmatprep.subr.mxu0 0.0
        %466 = vmatpush1.msra.mxu0 0.0
        %467 = vmatprep.subr.mxu0 0.0
        %468 = vmatpush1.msra.mxu0 0.0
        %469 = vmatprep.subr.mxu0 0.0
        %470 = vmatpush1.msra.mxu0 0.0
        %471 = vmatprep.subr.mxu0 0.0
        %472 = vmatpush1.msra.mxu0 0.0
        %473 = vmatprep.subr.mxu0 0.0
        %474 = vmatpush1.msra.mxu0 0.0
        %475 = vmatprep.subr.mxu0 0.0
        %476 = vmatpush1.msra.mxu0 0.0
        %477 = vmatprep.subr.mxu0 0.0
        %478 = vmatpush1.msra.mxu0 0.0
        %479 = vmatprep.subr.mxu0 0.0
        %480 = vmatpush1.msra.mxu0 0.0
        %481 = vmatprep.subr.mxu0 0.0
        %482 = vmatpush1.msra.mxu0 0.0
        %483 = vmatprep.mubr.f32.mxu0 0.0
        %484 = vmatmul.mubr.f32.gmra.mrb[0].mxu0 %v343
        %v485 = vpop.f32.mrb[0].mxu0
        %v486 = vadd.f32 %v412, %v485
        %v487 = vpop.f32.mrb[0].mxu0
        %v488 = vadd.f32 %v416, %v487
        %489 = vmatprep.mubr.f32.mxu0 0.0
        %490 = vmatmul.mubr.f32.gmra.mrb[0].mxu0 %v344
        %v491 = vpop.f32.mrb[0].mxu0
        %v492 = vadd.f32 %v412, %v491
        %v493 = vpop.f32.mrb[0].mxu0
        %v494 = vadd.f32 %v416, %v493
        %495 = vmatprep.mubr.f32.mxu0 0.0
        %496 = vmatmul.mubr.f32.gmra.mrb[0].mxu0 %v345
        %v497 = vpop.f32.mrb[0].mxu0
        %v498 = vadd.f32 %v412, %v497
        %v499 = vpop.f32.mrb[0].mxu0
        %v500 = vadd.f32 %v416, %v499
        %501 = vmatprep.mubr.f32.mxu0 0.0
        %502 = vmatmul.mubr.f32.gmra.mrb[0].mxu0 %v346
        %v503 = vpop.f32.mrb[0].mxu0
        %v504 = vadd.f32 %v412, %v503
        %v505 = vpop.f32.mrb[0].mxu0
        %v506 = vadd.f32 %v416, %v505
        %507 = vmatprep.mubr.f32.mxu0 0.0
        %508 = vmatmul.mubr.f32.gmra.mrb[0].mxu0 %v347
        %v509 = vpop.f32.mrb[0].mxu0
        %v510 = vadd.f32 %v412, %v509
        %v511 = vpop.f32.mrb[0].mxu0
        %v512 = vadd.f32 %v416, %v511
        %513 = vmatprep.mubr.f32.mxu0 0.0
        %514 = vmatmul.mubr.f32.gmra.mrb[0].mxu0 %v348
        %v515 = vpop.f32.mrb[0].mxu0
        %v516 = vadd.f32 %v412, %v515
        %v517 = vpop.f32.mrb[0].mxu0
        %v518 = vadd.f32 %v416, %v517
        %519 = vmatprep.mubr.f32.mxu0 0.0
        %520 = vmatmul.mubr.f32.gmra.mrb[0].mxu0 %v349
        %v521 = vpop.f32.mrb[0].mxu0
        %v522 = vadd.f32 %v412, %v521
        %v523 = vpop.f32.mrb[0].mxu0
        %v524 = vadd.f32 %v416, %v523
        %525 = vmatprep.mubr.f32.mxu0 0.0
        %526 = vmatmul.mubr.f32.gmra.mrb[0].mxu0 %v350
        %v527 = vpop.f32.mrb[0].mxu0
        %v528 = vadd.f32 %v412, %v527
        %v529 = vpop.f32.mrb[0].mxu0
        %v530 = vadd.f32 %v416, %v529
        %531 = vmatprep.mubr.f32.mxu0 0.0
        %532 = vmatmul.mubr.f32.gmra.mrb[0].mxu0 %v351
        %v533 = vpop.f32.mrb[0].mxu0
        %v534 = vadd.f32 %v412, %v533
        %v535 = vpop.f32.mrb[0].mxu0
        %v536 = vadd.f32 %v416, %v535
        %537 = vmatprep.mubr.f32.mxu0 0.0
        %538 = vmatmul.mubr.f32.gmra.mrb[0].mxu0 %v352
        %v539 = vpop.f32.mrb[0].mxu0
        %v540 = vadd.f32 %v412, %v539
        %v541 = vpop.f32.mrb[0].mxu0
        %v542 = vadd.f32 %v416, %v541
        %543 = vmatprep.mubr.f32.mxu0 0.0
        %544 = vmatmul.mubr.f32.gmra.mrb[0].mxu0 %v353
        %v545 = vpop.f32.mrb[0].mxu0
        %v546 = vadd.f32 %v412, %v545
        %v547 = vpop.f32.mrb[0].mxu0
        %v548 = vadd.f32 %v416, %v547
        %549 = vmatprep.mubr.f32.mxu0 0.0
        %550 = vmatmul.mubr.f32.gmra.mrb[0].mxu0 %v354
        %v551 = vpop.f32.mrb[0].mxu0
        %v552 = vadd.f32 %v412, %v551
        %v553 = vpop.f32.mrb[0].mxu0
        %v554 = vadd.f32 %v416, %v553
        %555 = vmatprep.mubr.f32.mxu0 0.0
        %556 = vmatmul.mubr.f32.gmra.mrb[0].mxu0 %v355
        %v557 = vpop.f32.mrb[0].mxu0
        %v558 = vadd.f32 %v412, %v557
        %v559 = vpop.f32.mrb[0].mxu0
        %v560 = vadd.f32 %v416, %v559
        %561 = vmatprep.mubr.f32.mxu0 0.0
        %562 = vmatmul.mubr.f32.gmra.mrb[0].mxu0 %v356
        %v563 = vpop.f32.mrb[0].mxu0
        %v564 = vadd.f32 %v412, %v563
        %v565 = vpop.f32.mrb[0].mxu0
        %v566 = vadd.f32 %v416, %v565
        %567 = vmatprep.mubr.f32.mxu0 0.0
        %568 = vmatmul.mubr.f32.gmra.mrb[0].mxu0 %v357
        %v569 = vpop.f32.mrb[0].mxu0
        %v570 = vadd.f32 %v412, %v569
        %v571 = vpop.f32.mrb[0].mxu0
        %v572 = vadd.f32 %v416, %v571
        %573 = vmatprep.mubr.f32.mxu0 0.0
        %574 = vmatmul.mubr.f32.gmra.mrb[0].mxu0 %v358
        %v575 = vpop.f32.mrb[0].mxu0
        %v576 = vadd.f32 %v412, %v575
        %v577 = vpop.f32.mrb[0].mxu0
        %v578 = vadd.f32 %v416, %v577
        %579 = vmatprep.mubr.f32.mxu0 0.0
        %580 = vmatmul.mubr.f32.gmra.mrb[0].mxu0 %v359
        %v581 = vpop.f32.mrb[0].mxu0
        %v582 = vadd.f32 %v412, %v581
        %v583 = vpop.f32.mrb[0].mxu0
        %v584 = vadd.f32 %v416, %v583
        %585 = vmatprep.mubr.f32.mxu0 0.0
        %586 = vmatmul.mubr.f32.gmra.mrb[0].mxu0 %v360
        %v587 = vpop.f32.mrb[0].mxu0
        %v588 = vadd.f32 %v412, %v587
        %v589 = vpop.f32.mrb[0].mxu0
        %v590 = vadd.f32 %v416, %v589
        %591 = vmatprep.mubr.f32.mxu0 0.0
        %592 = vmatmul.mubr.f32.gmra.mrb[0].mxu0 %v361
        %v593 = vpop.f32.mrb[0].mxu0
        %v594 = vadd.f32 %v412, %v593
        %v595 = vpop.f32.mrb[0].mxu0
        %v596 = vadd.f32 %v416, %v595
        %597 = vmatprep.mubr.f32.mxu0 0.0
        %598 = vmatmul.mubr.f32.gmra.mrb[0].mxu0 %v362
        %v599 = vpop.f32.mrb[0].mxu0
        %v600 = vadd.f32 %v412, %v599
        %v601 = vpop.f32.mrb[0].mxu0
        %v602 = vadd.f32 %v416, %v601
        %603 = vmatprep.mubr.f32.mxu0 0.0
        %604 = vmatmul.mubr.f32.gmra.mrb[0].mxu0 %v363
        %v605 = vpop.f32.mrb[0].mxu0
        %v606 = vadd.f32 %v412, %v605
        %v607 = vpop.f32.mrb[0].mxu0
        %v608 = vadd.f32 %v416, %v607
        %609 = vmatprep.mubr.f32.mxu0 0.0
        %610 = vmatmul.mubr.f32.gmra.mrb[0].mxu0 %v364
        %v611 = vpop.f32.mrb[0].mxu0
        %v612 = vadd.f32 %v412, %v611
        %v613 = vpop.f32.mrb[0].mxu0
        %v614 = vadd.f32 %v416, %v613
        %615 = vmatprep.mubr.f32.mxu0 0.0
        %616 = vmatmul.mubr.f32.gmra.mrb[0].mxu0 %v365
        %v617 = vpop.f32.mrb[0].mxu0
        %v618 = vadd.f32 %v412, %v617
        %v619 = vpop.f32.mrb[0].mxu0
        %v620 = vadd.f32 %v416, %v619
        %621 = vmatprep.mubr.f32.mxu0 0.0
        %622 = vmatmul.mubr.f32.gmra.mrb[0].mxu0 %v366
        %v623 = vpop.f32.mrb[0].mxu0
        %v624 = vadd.f32 %v412, %v623
        %v625 = vpop.f32.mrb[0].mxu0
        %v626 = vadd.f32 %v416, %v625
        %627 = vmatprep.mubr.f32.mxu0 0.0
        %628 = vmatmul.mubr.f32.gmra.mrb[0].mxu0 %v367
        %v629 = vpop.f32.mrb[0].mxu0
        %v630 = vadd.f32 %v412, %v629
        %v631 = vpop.f32.mrb[0].mxu0
        %v632 = vadd.f32 %v416, %v631
        %633 = vmatprep.mubr.f32.mxu0 0.0
        %634 = vmatmul.mubr.f32.gmra.mrb[0].mxu0 %v368
        %v635 = vpop.f32.mrb[0].mxu0
        %v636 = vadd.f32 %v412, %v635
        %v637 = vpop.f32.mrb[0].mxu0
        %v638 = vadd.f32 %v416, %v637
        %639 = vmatprep.mubr.f32.mxu0 0.0
        %640 = vmatmul.mubr.f32.gmra.mrb[0].mxu0 %v369
        %v641 = vpop.f32.mrb[0].mxu0
        %v642 = vadd.f32 %v412, %v641
        %v643 = vpop.f32.mrb[0].mxu0
        %v644 = vadd.f32 %v416, %v643
        %645 = vmatprep.mubr.f32.mxu0 0.0
        %646 = vmatmul.mubr.f32.gmra.mrb[0].mxu0 %v370
        %v647 = vpop.f32.mrb[0].mxu0
        %v648 = vadd.f32 %v412, %v647
        %v649 = vpop.f32.mrb[0].mxu0
        %v650 = vadd.f32 %v416, %v649
        %651 = vmatprep.mubr.f32.mxu0 0.0
        %652 = vmatmul.mubr.f32.gmra.mrb[0].mxu0 %v371
        %v653 = vpop.f32.mrb[0].mxu0
        %v654 = vadd.f32 %v412, %v653
        %v655 = vpop.f32.mrb[0].mxu0
        %v656 = vadd.f32 %v416, %v655
        %657 = vmatprep.mubr.f32.mxu0 0.0
        %658 = vmatmul.mubr.f32.gmra.mrb[0].mxu0 %v372
        %v659 = vpop.f32.mrb[0].mxu0
        %v660 = vadd.f32 %v412, %v659
        %v661 = vpop.f32.mrb[0].mxu0
        %v662 = vadd.f32 %v416, %v661
        %663 = vmatprep.mubr.f32.mxu0 0.0
        %664 = vmatmul.mubr.f32.gmra.mrb[0].mxu0 %v373
        %v665 = vpop.f32.mrb[0].mxu0
        %v666 = vadd.f32 %v412, %v665
        %v667 = vpop.f32.mrb[0].mxu0
        %v668 = vadd.f32 %v416, %v667
        %669 = vmatprep.mubr.f32.mxu0 0.0
        %670 = vmatmul.mubr.f32.gmra.mrb[0].mxu0 %v374
        %v671 = vpop.f32.mrb[0].mxu0
        %v672 = vadd.f32 %v412, %v671
        %v673 = vpop.f32.mrb[0].mxu0
        %v674 = vadd.f32 %v416, %v673
        %675 = vdwg.mxu0
        %v676 = vmax.f32 %v486, 0.0
        %v677 = vmax.f32 %v488, 0.0
        %v678 = vmax.f32 %v492, 0.0
        %v679 = vmax.f32 %v494, 0.0
        %v680 = vmax.f32 %v498, 0.0
        %v681 = vmax.f32 %v500, 0.0
        %v682 = vmax.f32 %v504, 0.0
        %v683 = vmax.f32 %v506, 0.0
        %v684 = vmax.f32 %v510, 0.0
        %v685 = vmax.f32 %v512, 0.0
        %v686 = vmax.f32 %v516, 0.0
        %v687 = vmax.f32 %v518, 0.0
        %v688 = vmax.f32 %v522, 0.0
        %v689 = vmax.f32 %v524, 0.0
        %v690 = vmax.f32 %v528, 0.0
        %v691 = vmax.f32 %v530, 0.0
        %v692 = vmax.f32 %v534, 0.0
        %v693 = vmax.f32 %v536, 0.0
        %v694 = vmax.f32 %v540, 0.0
        %v695 = vmax.f32 %v542, 0.0
        %v696 = vmax.f32 %v546, 0.0
        %v697 = vmax.f32 %v548, 0.0
        %v698 = vmax.f32 %v552, 0.0
        %v699 = vmax.f32 %v554, 0.0
        %v700 = vmax.f32 %v558, 0.0
        %v701 = vmax.f32 %v560, 0.0
        %v702 = vmax.f32 %v564, 0.0
        %v703 = vmax.f32 %v566, 0.0
        %v704 = vmax.f32 %v570, 0.0
        %v705 = vmax.f32 %v572, 0.0
        %v706 = vmax.f32 %v576, 0.0
        %v707 = vmax.f32 %v578, 0.0
        %v708 = vmax.f32 %v582, 0.0
        %v709 = vmax.f32 %v584, 0.0
        %v710 = vmax.f32 %v588, 0.0
        %v711 = vmax.f32 %v590, 0.0
        %v712 = vmax.f32 %v594, 0.0
        %v713 = vmax.f32 %v596, 0.0
        %v714 = vmax.f32 %v600, 0.0
        %v715 = vmax.f32 %v602, 0.0
        %v716 = vmax.f32 %v606, 0.0
        %v717 = vmax.f32 %v608, 0.0
        %v718 = vmax.f32 %v612, 0.0
        %v719 = vmax.f32 %v614, 0.0
        %v720 = vmax.f32 %v618, 0.0
        %v721 = vmax.f32 %v620, 0.0
        %v722 = vmax.f32 %v624, 0.0
        %v723 = vmax.f32 %v626, 0.0
        %v724 = vmax.f32 %v630, 0.0
        %v725 = vmax.f32 %v632, 0.0
        %v726 = vmax.f32 %v636, 0.0
        %v727 = vmax.f32 %v638, 0.0
        %v728 = vmax.f32 %v642, 0.0
        %v729 = vmax.f32 %v644, 0.0
        %v730 = vmax.f32 %v648, 0.0
        %v731 = vmax.f32 %v650, 0.0
        %v732 = vmax.f32 %v654, 0.0
        %v733 = vmax.f32 %v656, 0.0
        %v734 = vmax.f32 %v660, 0.0
        %v735 = vmax.f32 %v662, 0.0
        %v736 = vmax.f32 %v666, 0.0
        %v737 = vmax.f32 %v668, 0.0
        %v738 = vmax.f32 %v672, 0.0
        %v739 = vmax.f32 %v674, 0.0
        %740 = vst [vmem:[#allocation2] sm:$0xff] %v676
        %741 = vst [vmem:[#allocation2 + $0x8] sm:$0xff] %v677
        %742 = vst [vmem:[#allocation2 + $0x10] sm:$0xff] %v678
        %743 = vst [vmem:[#allocation2 + $0x18] sm:$0xff] %v679
        %744 = vst [vmem:[#allocation2 + $0x20] sm:$0xff] %v680
        %745 = vst [vmem:[#allocation2 + $0x28] sm:$0xff] %v681
        %746 = vst [vmem:[#allocation2 + $0x30] sm:$0xff] %v682
        %747 = vst [vmem:[#allocation2 + $0x38] sm:$0xff] %v683
        %748 = vst [vmem:[#allocation2 + $0x40] sm:$0xff] %v684
        %749 = vst [vmem:[#allocation2 + $0x48] sm:$0xff] %v685
        %750 = vst [vmem:[#allocation2 + $0x50] sm:$0xff] %v686
        %751 = vst [vmem:[#allocation2 + $0x58] sm:$0xff] %v687
        %752 = vst [vmem:[#allocation2 + $0x60] sm:$0xff] %v688
        %753 = vst [vmem:[#allocation2 + $0x68] sm:$0xff] %v689
        %754 = vst [vmem:[#allocation2 + $0x70] sm:$0xff] %v690
        %755 = vst [vmem:[#allocation2 + $0x78] sm:$0xff] %v691
        %756 = vst [vmem:[#allocation2 + $0x80] sm:$0xff] %v692
        %757 = vst [vmem:[#allocation2 + $0x88] sm:$0xff] %v693
        %758 = vst [vmem:[#allocation2 + $0x90] sm:$0xff] %v694
        %759 = vst [vmem:[#allocation2 + $0x98] sm:$0xff] %v695
        %760 = vst [vmem:[#allocation2 + $0xa0] sm:$0xff] %v696
        %761 = vst [vmem:[#allocation2 + $0xa8] sm:$0xff] %v697
        %762 = vst [vmem:[#allocation2 + $0xb0] sm:$0xff] %v698
        %763 = vst [vmem:[#allocation2 + $0xb8] sm:$0xff] %v699
        %764 = vst [vmem:[#allocation2 + $0xc0] sm:$0xff] %v700
        %765 = vst [vmem:[#allocation2 + $0xc8] sm:$0xff] %v701
        %766 = vst [vmem:[#allocation2 + $0xd0] sm:$0xff] %v702
        %767 = vst [vmem:[#allocation2 + $0xd8] sm:$0xff] %v703
        %768 = vst [vmem:[#allocation2 + $0xe0] sm:$0xff] %v704
        %769 = vst [vmem:[#allocation2 + $0xe8] sm:$0xff] %v705
        %770 = vst [vmem:[#allocation2 + $0xf0] sm:$0xff] %v706
        %771 = vst [vmem:[#allocation2 + $0xf8] sm:$0xff] %v707
        %772 = vst [vmem:[#allocation2 + $0x100] sm:$0xff] %v708
        %773 = vst [vmem:[#allocation2 + $0x108] sm:$0xff] %v709
        %774 = vst [vmem:[#allocation2 + $0x110] sm:$0xff] %v710
        %775 = vst [vmem:[#allocation2 + $0x118] sm:$0xff] %v711
        %776 = vst [vmem:[#allocation2 + $0x120] sm:$0xff] %v712
        %777 = vst [vmem:[#allocation2 + $0x128] sm:$0xff] %v713
        %778 = vst [vmem:[#allocation2 + $0x130] sm:$0xff] %v714
        %779 = vst [vmem:[#allocation2 + $0x138] sm:$0xff] %v715
        %780 = vst [vmem:[#allocation2 + $0x140] sm:$0xff] %v716
        %781 = vst [vmem:[#allocation2 + $0x148] sm:$0xff] %v717
        %782 = vst [vmem:[#allocation2 + $0x150] sm:$0xff] %v718
        %783 = vst [vmem:[#allocation2 + $0x158] sm:$0xff] %v719
        %784 = vst [vmem:[#allocation2 + $0x160] sm:$0xff] %v720
        %785 = vst [vmem:[#allocation2 + $0x168] sm:$0xff] %v721
        %786 = vst [vmem:[#allocation2 + $0x170] sm:$0xff] %v722
        %787 = vst [vmem:[#allocation2 + $0x178] sm:$0xff] %v723
        %788 = vst [vmem:[#allocation2 + $0x180] sm:$0xff] %v724
        %789 = vst [vmem:[#allocation2 + $0x188] sm:$0xff] %v725
        %790 = vst [vmem:[#allocation2 + $0x190] sm:$0xff] %v726
        %791 = vst [vmem:[#allocation2 + $0x198] sm:$0xff] %v727
        %792 = vst [vmem:[#allocation2 + $0x1a0] sm:$0xff] %v728
        %793 = vst [vmem:[#allocation2 + $0x1a8] sm:$0xff] %v729
        %794 = vst [vmem:[#allocation2 + $0x1b0] sm:$0xff] %v730
        %795 = vst [vmem:[#allocation2 + $0x1b8] sm:$0xff] %v731
        %796 = vst [vmem:[#allocation2 + $0x1c0] sm:$0xff] %v732
        %797 = vst [vmem:[#allocation2 + $0x1c8] sm:$0xff] %v733
        %798 = vst [vmem:[#allocation2 + $0x1d0] sm:$0xff] %v734
        %799 = vst [vmem:[#allocation2 + $0x1d8] sm:$0xff] %v735
        %800 = vst [vmem:[#allocation2 + $0x1e0] sm:$0xff] %v736
        %801 = vst [vmem:[#allocation2 + $0x1e8] sm:$0xff] %v737
        %802 = vst [vmem:[#allocation2 + $0x1f0] sm:$0xff] %v738
        %803 = vst [vmem:[#allocation2 + $0x1f8] sm:$0xff] %v739
        %v804 = vld [vmem:[#allocation2] sm:$0xff]
        %v805 = vld [vmem:[#allocation2 + $0x8] sm:$0xff]
        %v806 = vld [vmem:[#allocation2 + $0x10] sm:$0xff]
        %v807 = vld [vmem:[#allocation2 + $0x18] sm:$0xff]
        %v808 = vld [vmem:[#allocation2 + $0x20] sm:$0xff]
        %v809 = vld [vmem:[#allocation2 + $0x28] sm:$0xff]
        %v810 = vld [vmem:[#allocation2 + $0x30] sm:$0xff]
        %v811 = vld [vmem:[#allocation2 + $0x38] sm:$0xff]
        %v812 = vld [vmem:[#allocation2 + $0x40] sm:$0xff]
        %v813 = vld [vmem:[#allocation2 + $0x48] sm:$0xff]
        %v814 = vld [vmem:[#allocation2 + $0x50] sm:$0xff]
        %v815 = vld [vmem:[#allocation2 + $0x58] sm:$0xff]
        %v816 = vld [vmem:[#allocation2 + $0x60] sm:$0xff]
        %v817 = vld [vmem:[#allocation2 + $0x68] sm:$0xff]
        %v818 = vld [vmem:[#allocation2 + $0x70] sm:$0xff]
        %v819 = vld [vmem:[#allocation2 + $0x78] sm:$0xff]
        %v820 = vld [vmem:[#allocation2 + $0x80] sm:$0xff]
        %v821 = vld [vmem:[#allocation2 + $0x88] sm:$0xff]
        %v822 = vld [vmem:[#allocation2 + $0x90] sm:$0xff]
        %v823 = vld [vmem:[#allocation2 + $0x98] sm:$0xff]
        %v824 = vld [vmem:[#allocation2 + $0xa0] sm:$0xff]
        %v825 = vld [vmem:[#allocation2 + $0xa8] sm:$0xff]
        %v826 = vld [vmem:[#allocation2 + $0xb0] sm:$0xff]
        %v827 = vld [vmem:[#allocation2 + $0xb8] sm:$0xff]
        %v828 = vld [vmem:[#allocation2 + $0xc0] sm:$0xff]
        %v829 = vld [vmem:[#allocation2 + $0xc8] sm:$0xff]
        %v830 = vld [vmem:[#allocation2 + $0xd0] sm:$0xff]
        %v831 = vld [vmem:[#allocation2 + $0xd8] sm:$0xff]
        %v832 = vld [vmem:[#allocation2 + $0xe0] sm:$0xff]
        %v833 = vld [vmem:[#allocation2 + $0xe8] sm:$0xff]
        %v834 = vld [vmem:[#allocation2 + $0xf0] sm:$0xff]
        %v835 = vld [vmem:[#allocation2 + $0xf8] sm:$0xff]
        %v836 = vld [vmem:[#allocation2 + $0x100] sm:$0xff]
        %v837 = vld [vmem:[#allocation2 + $0x108] sm:$0xff]
        %v838 = vld [vmem:[#allocation2 + $0x110] sm:$0xff]
        %v839 = vld [vmem:[#allocation2 + $0x118] sm:$0xff]
        %v840 = vld [vmem:[#allocation2 + $0x120] sm:$0xff]
        %v841 = vld [vmem:[#allocation2 + $0x128] sm:$0xff]
        %v842 = vld [vmem:[#allocation2 + $0x130] sm:$0xff]
        %v843 = vld [vmem:[#allocation2 + $0x138] sm:$0xff]
        %v844 = vld [vmem:[#allocation2 + $0x140] sm:$0xff]
        %v845 = vld [vmem:[#allocation2 + $0x148] sm:$0xff]
        %v846 = vld [vmem:[#allocation2 + $0x150] sm:$0xff]
        %v847 = vld [vmem:[#allocation2 + $0x158] sm:$0xff]
        %v848 = vld [vmem:[#allocation2 + $0x160] sm:$0xff]
        %v849 = vld [vmem:[#allocation2 + $0x168] sm:$0xff]
        %v850 = vld [vmem:[#allocation2 + $0x170] sm:$0xff]
        %v851 = vld [vmem:[#allocation2 + $0x178] sm:$0xff]
        %v852 = vld [vmem:[#allocation2 + $0x180] sm:$0xff]
        %v853 = vld [vmem:[#allocation2 + $0x188] sm:$0xff]
        %v854 = vld [vmem:[#allocation2 + $0x190] sm:$0xff]
        %v855 = vld [vmem:[#allocation2 + $0x198] sm:$0xff]
        %v856 = vld [vmem:[#allocation2 + $0x1a0] sm:$0xff]
        %v857 = vld [vmem:[#allocation2 + $0x1a8] sm:$0xff]
        %v858 = vld [vmem:[#allocation2 + $0x1b0] sm:$0xff]
        %v859 = vld [vmem:[#allocation2 + $0x1b8] sm:$0xff]
        %v860 = vld [vmem:[#allocation2 + $0x1c0] sm:$0xff]
        %v861 = vld [vmem:[#allocation2 + $0x1c8] sm:$0xff]
        %v862 = vld [vmem:[#allocation2 + $0x1d0] sm:$0xff]
        %v863 = vld [vmem:[#allocation2 + $0x1d8] sm:$0xff]
        %v864 = vld [vmem:[#allocation2 + $0x1e0] sm:$0xff]
        %v865 = vld [vmem:[#allocation2 + $0x1e8] sm:$0xff]
        %v866 = vld [vmem:[#allocation2 + $0x1f0] sm:$0xff]
        %v867 = vld [vmem:[#allocation2 + $0x1f8] sm:$0xff]
        %v868 = vld [vmem:[#allocation9] sm:$0xff]
        %v869 = vld [vmem:[#allocation9 + $0x8] sm:$0xff]
        %v870 = vld [vmem:[#allocation9 + $0x10] sm:$0xff]
        %v871 = vld [vmem:[#allocation9 + $0x18] sm:$0xff]
        %v872 = vld [vmem:[#allocation9 + $0x20] sm:$0xff]
        %v873 = vld [vmem:[#allocation9 + $0x28] sm:$0xff]
        %v874 = vld [vmem:[#allocation9 + $0x30] sm:$0xff]
        %v875 = vld [vmem:[#allocation9 + $0x38] sm:$0xff]
        %v876 = vld [vmem:[#allocation9 + $0x40] sm:$0xff]
        %v877 = vld [vmem:[#allocation9 + $0x48] sm:$0xff]
        %v878 = vld [vmem:[#allocation9 + $0x50] sm:$0xff]
        %v879 = vld [vmem:[#allocation9 + $0x58] sm:$0xff]
        %v880 = vld [vmem:[#allocation9 + $0x60] sm:$0xff]
        %v881 = vld [vmem:[#allocation9 + $0x68] sm:$0xff]
        %v882 = vld [vmem:[#allocation9 + $0x70] sm:$0xff]
        %v883 = vld [vmem:[#allocation9 + $0x78] sm:$0xff]
        %v884 = vld [vmem:[#allocation9 + $0x80] sm:$0xff]
        %v885 = vld [vmem:[#allocation9 + $0x88] sm:$0xff]
        %v886 = vld [vmem:[#allocation9 + $0x90] sm:$0xff]
        %v887 = vld [vmem:[#allocation9 + $0x98] sm:$0xff]
        %v888 = vld [vmem:[#allocation9 + $0xa0] sm:$0xff]
        %v889 = vld [vmem:[#allocation9 + $0xa8] sm:$0xff]
        %v890 = vld [vmem:[#allocation9 + $0xb0] sm:$0xff]
        %v891 = vld [vmem:[#allocation9 + $0xb8] sm:$0xff]
        %v892 = vld [vmem:[#allocation9 + $0xc0] sm:$0xff]
        %v893 = vld [vmem:[#allocation9 + $0xc8] sm:$0xff]
        %v894 = vld [vmem:[#allocation9 + $0xd0] sm:$0xff]
        %v895 = vld [vmem:[#allocation9 + $0xd8] sm:$0xff]
        %v896 = vld [vmem:[#allocation9 + $0xe0] sm:$0xff]
        %v897 = vld [vmem:[#allocation9 + $0xe8] sm:$0xff]
        %v898 = vld [vmem:[#allocation9 + $0xf0] sm:$0xff]
        %v899 = vld [vmem:[#allocation9 + $0xf8] sm:$0xff]
        %v900 = vld [vmem:[#allocation9 + $0x100] sm:$0xff]
        %v901 = vld [vmem:[#allocation9 + $0x108] sm:$0xff]
        %v902 = vld [vmem:[#allocation9 + $0x110] sm:$0xff]
        %v903 = vld [vmem:[#allocation9 + $0x118] sm:$0xff]
        %v904 = vld [vmem:[#allocation9 + $0x120] sm:$0xff]
        %v905 = vld [vmem:[#allocation9 + $0x128] sm:$0xff]
        %v906 = vld [vmem:[#allocation9 + $0x130] sm:$0xff]
        %v907 = vld [vmem:[#allocation9 + $0x138] sm:$0xff]
        %v908 = vld [vmem:[#allocation9 + $0x140] sm:$0xff]
        %v909 = vld [vmem:[#allocation9 + $0x148] sm:$0xff]
        %v910 = vld [vmem:[#allocation9 + $0x150] sm:$0xff]
        %v911 = vld [vmem:[#allocation9 + $0x158] sm:$0xff]
        %v912 = vld [vmem:[#allocation9 + $0x160] sm:$0xff]
        %v913 = vld [vmem:[#allocation9 + $0x168] sm:$0xff]
        %v914 = vld [vmem:[#allocation9 + $0x170] sm:$0xff]
        %v915 = vld [vmem:[#allocation9 + $0x178] sm:$0xff]
        %v916 = vld [vmem:[#allocation9 + $0x180] sm:$0xff]
        %v917 = vld [vmem:[#allocation9 + $0x188] sm:$0xff]
        %v918 = vld [vmem:[#allocation9 + $0x190] sm:$0xff]
        %v919 = vld [vmem:[#allocation9 + $0x198] sm:$0xff]
        %v920 = vld [vmem:[#allocation9 + $0x1a0] sm:$0xff]
        %v921 = vld [vmem:[#allocation9 + $0x1a8] sm:$0xff]
        %v922 = vld [vmem:[#allocation9 + $0x1b0] sm:$0xff]
        %v923 = vld [vmem:[#allocation9 + $0x1b8] sm:$0xff]
        %v924 = vld [vmem:[#allocation9 + $0x1c0] sm:$0xff]
        %v925 = vld [vmem:[#allocation9 + $0x1c8] sm:$0xff]
        %v926 = vld [vmem:[#allocation9 + $0x1d0] sm:$0xff]
        %v927 = vld [vmem:[#allocation9 + $0x1d8] sm:$0xff]
        %v928 = vld [vmem:[#allocation9 + $0x1e0] sm:$0xff]
        %v929 = vld [vmem:[#allocation9 + $0x1e8] sm:$0xff]
        %v930 = vld [vmem:[#allocation9 + $0x1f0] sm:$0xff]
        %v931 = vld [vmem:[#allocation9 + $0x1f8] sm:$0xff]
        %v932 = vld [vmem:[%s4] sm:$0x3]
        %v934 = vlaneseq
        %v935 = vshrl.u32 %v934, 7
        %v936 = vsub.s32 0, %v935
        %v937 = vrot.slane %v932, %v936
        %v938 = vlaneseq
        %v939 = vshrl.u32 %v938, 7
        %v940 = vsub.s32 1, %v939
        %v941 = vrot.slane %v932, %v940
        %944 = vmatprep.subr.mxu0 %v869
        %945 = vmatpush1.msra.mxu0 %v868
        %946 = vmatprep.subr.mxu0 %v871
        %947 = vmatpush1.msra.mxu0 %v870
        %948 = vmatprep.subr.mxu0 %v873
        %949 = vmatpush1.msra.mxu0 %v872
        %950 = vmatprep.subr.mxu0 %v875
        %951 = vmatpush1.msra.mxu0 %v874
        %952 = vmatprep.subr.mxu0 %v877
        %953 = vmatpush1.msra.mxu0 %v876
        %954 = vmatprep.subr.mxu0 %v879
        %955 = vmatpush1.msra.mxu0 %v878
        %956 = vmatprep.subr.mxu0 %v881
        %957 = vmatpush1.msra.mxu0 %v880
        %958 = vmatprep.subr.mxu0 %v883
        %959 = vmatpush1.msra.mxu0 %v882
        %960 = vmatprep.subr.mxu0 %v885
        %961 = vmatpush1.msra.mxu0 %v884
        %962 = vmatprep.subr.mxu0 %v887
        %963 = vmatpush1.msra.mxu0 %v886
        %964 = vmatprep.subr.mxu0 %v889
        %965 = vmatpush1.msra.mxu0 %v888
        %966 = vmatprep.subr.mxu0 %v891
        %967 = vmatpush1.msra.mxu0 %v890
        %968 = vmatprep.subr.mxu0 %v893
        %969 = vmatpush1.msra.mxu0 %v892
        %970 = vmatprep.subr.mxu0 %v895
        %971 = vmatpush1.msra.mxu0 %v894
        %972 = vmatprep.subr.mxu0 %v897
        %973 = vmatpush1.msra.mxu0 %v896
        %974 = vmatprep.subr.mxu0 %v899
        %975 = vmatpush1.msra.mxu0 %v898
        %976 = vmatprep.subr.mxu0 %v901
        %977 = vmatpush1.msra.mxu0 %v900
        %978 = vmatprep.subr.mxu0 %v903
        %979 = vmatpush1.msra.mxu0 %v902
        %980 = vmatprep.subr.mxu0 %v905
        %981 = vmatpush1.msra.mxu0 %v904
        %982 = vmatprep.subr.mxu0 %v907
        %983 = vmatpush1.msra.mxu0 %v906
        %984 = vmatprep.subr.mxu0 %v909
        %985 = vmatpush1.msra.mxu0 %v908
        %986 = vmatprep.subr.mxu0 %v911
        %987 = vmatpush1.msra.mxu0 %v910
        %988 = vmatprep.subr.mxu0 %v913
        %989 = vmatpush1.msra.mxu0 %v912
        %990 = vmatprep.subr.mxu0 %v915
        %991 = vmatpush1.msra.mxu0 %v914
        %992 = vmatprep.subr.mxu0 %v917
        %993 = vmatpush1.msra.mxu0 %v916
        %994 = vmatprep.subr.mxu0 %v919
        %995 = vmatpush1.msra.mxu0 %v918
        %996 = vmatprep.subr.mxu0 %v921
        %997 = vmatpush1.msra.mxu0 %v920
        %998 = vmatprep.subr.mxu0 %v923
        %999 = vmatpush1.msra.mxu0 %v922
        %1000 = vmatprep.subr.mxu0 %v925
        %1001 = vmatpush1.msra.mxu0 %v924
        %1002 = vmatprep.subr.mxu0 %v927
        %1003 = vmatpush1.msra.mxu0 %v926
        %1004 = vmatprep.subr.mxu0 %v929
        %1005 = vmatpush1.msra.mxu0 %v928
        %1006 = vmatprep.subr.mxu0 %v931
        %1007 = vmatpush1.msra.mxu0 %v930
        %1008 = vmatprep.mubr.f32.mxu0 %v805
        %1009 = vmatmul.mubr.f32.gmra.mrb[0].mxu0 %v804
        %v1010 = vpop.f32.mrb[0].mxu0
        %v1011 = vadd.f32 %v937, %v1010
        %v1012 = vpop.f32.mrb[0].mxu0
        %v1013 = vadd.f32 %v941, %v1012
        %1014 = vmatprep.mubr.f32.mxu0 %v807
        %1015 = vmatmul.mubr.f32.gmra.mrb[0].mxu0 %v806
        %v1016 = vpop.f32.mrb[0].mxu0
        %v1017 = vadd.f32 %v937, %v1016
        %v1018 = vpop.f32.mrb[0].mxu0
        %v1019 = vadd.f32 %v941, %v1018
        %1020 = vmatprep.mubr.f32.mxu0 %v809
        %1021 = vmatmul.mubr.f32.gmra.mrb[0].mxu0 %v808
        %v1022 = vpop.f32.mrb[0].mxu0
        %v1023 = vadd.f32 %v937, %v1022
        %v1024 = vpop.f32.mrb[0].mxu0
        %v1025 = vadd.f32 %v941, %v1024
        %1026 = vmatprep.mubr.f32.mxu0 %v811
        %1027 = vmatmul.mubr.f32.gmra.mrb[0].mxu0 %v810
        %v1028 = vpop.f32.mrb[0].mxu0
        %v1029 = vadd.f32 %v937, %v1028
        %v1030 = vpop.f32.mrb[0].mxu0
        %v1031 = vadd.f32 %v941, %v1030
        %1032 = vmatprep.mubr.f32.mxu0 %v813
        %1033 = vmatmul.mubr.f32.gmra.mrb[0].mxu0 %v812
        %v1034 = vpop.f32.mrb[0].mxu0
        %v1035 = vadd.f32 %v937, %v1034
        %v1036 = vpop.f32.mrb[0].mxu0
        %v1037 = vadd.f32 %v941, %v1036
        %1038 = vmatprep.mubr.f32.mxu0 %v815
        %1039 = vmatmul.mubr.f32.gmra.mrb[0].mxu0 %v814
        %v1040 = vpop.f32.mrb[0].mxu0
        %v1041 = vadd.f32 %v937, %v1040
        %v1042 = vpop.f32.mrb[0].mxu0
        %v1043 = vadd.f32 %v941, %v1042
        %1044 = vmatprep.mubr.f32.mxu0 %v817
        %1045 = vmatmul.mubr.f32.gmra.mrb[0].mxu0 %v816
        %v1046 = vpop.f32.mrb[0].mxu0
        %v1047 = vadd.f32 %v937, %v1046
        %v1048 = vpop.f32.mrb[0].mxu0
        %v1049 = vadd.f32 %v941, %v1048
        %1050 = vmatprep.mubr.f32.mxu0 %v819
        %1051 = vmatmul.mubr.f32.gmra.mrb[0].mxu0 %v818
        %v1052 = vpop.f32.mrb[0].mxu0
        %v1053 = vadd.f32 %v937, %v1052
        %v1054 = vpop.f32.mrb[0].mxu0
        %v1055 = vadd.f32 %v941, %v1054
        %1056 = vmatprep.mubr.f32.mxu0 %v821
        %1057 = vmatmul.mubr.f32.gmra.mrb[0].mxu0 %v820
        %v1058 = vpop.f32.mrb[0].mxu0
        %v1059 = vadd.f32 %v937, %v1058
        %v1060 = vpop.f32.mrb[0].mxu0
        %v1061 = vadd.f32 %v941, %v1060
        %1062 = vmatprep.mubr.f32.mxu0 %v823
        %1063 = vmatmul.mubr.f32.gmra.mrb[0].mxu0 %v822
        %v1064 = vpop.f32.mrb[0].mxu0
        %v1065 = vadd.f32 %v937, %v1064
        %v1066 = vpop.f32.mrb[0].mxu0
        %v1067 = vadd.f32 %v941, %v1066
        %1068 = vmatprep.mubr.f32.mxu0 %v825
        %1069 = vmatmul.mubr.f32.gmra.mrb[0].mxu0 %v824
        %v1070 = vpop.f32.mrb[0].mxu0
        %v1071 = vadd.f32 %v937, %v1070
        %v1072 = vpop.f32.mrb[0].mxu0
        %v1073 = vadd.f32 %v941, %v1072
        %1074 = vmatprep.mubr.f32.mxu0 %v827
        %1075 = vmatmul.mubr.f32.gmra.mrb[0].mxu0 %v826
        %v1076 = vpop.f32.mrb[0].mxu0
        %v1077 = vadd.f32 %v937, %v1076
        %v1078 = vpop.f32.mrb[0].mxu0
        %v1079 = vadd.f32 %v941, %v1078
        %1080 = vmatprep.mubr.f32.mxu0 %v829
        %1081 = vmatmul.mubr.f32.gmra.mrb[0].mxu0 %v828
        %v1082 = vpop.f32.mrb[0].mxu0
        %v1083 = vadd.f32 %v937, %v1082
        %v1084 = vpop.f32.mrb[0].mxu0
        %v1085 = vadd.f32 %v941, %v1084
        %1086 = vmatprep.mubr.f32.mxu0 %v831
        %1087 = vmatmul.mubr.f32.gmra.mrb[0].mxu0 %v830
        %v1088 = vpop.f32.mrb[0].mxu0
        %v1089 = vadd.f32 %v937, %v1088
        %v1090 = vpop.f32.mrb[0].mxu0
        %v1091 = vadd.f32 %v941, %v1090
        %1092 = vmatprep.mubr.f32.mxu0 %v833
        %1093 = vmatmul.mubr.f32.gmra.mrb[0].mxu0 %v832
        %v1094 = vpop.f32.mrb[0].mxu0
        %v1095 = vadd.f32 %v937, %v1094
        %v1096 = vpop.f32.mrb[0].mxu0
        %v1097 = vadd.f32 %v941, %v1096
        %1098 = vmatprep.mubr.f32.mxu0 %v835
        %1099 = vmatmul.mubr.f32.gmra.mrb[0].mxu0 %v834
        %v1100 = vpop.f32.mrb[0].mxu0
        %v1101 = vadd.f32 %v937, %v1100
        %v1102 = vpop.f32.mrb[0].mxu0
        %v1103 = vadd.f32 %v941, %v1102
        %1104 = vmatprep.mubr.f32.mxu0 %v837
        %1105 = vmatmul.mubr.f32.gmra.mrb[0].mxu0 %v836
        %v1106 = vpop.f32.mrb[0].mxu0
        %v1107 = vadd.f32 %v937, %v1106
        %v1108 = vpop.f32.mrb[0].mxu0
        %v1109 = vadd.f32 %v941, %v1108
        %1110 = vmatprep.mubr.f32.mxu0 %v839
        %1111 = vmatmul.mubr.f32.gmra.mrb[0].mxu0 %v838
        %v1112 = vpop.f32.mrb[0].mxu0
        %v1113 = vadd.f32 %v937, %v1112
        %v1114 = vpop.f32.mrb[0].mxu0
        %v1115 = vadd.f32 %v941, %v1114
        %1116 = vmatprep.mubr.f32.mxu0 %v841
        %1117 = vmatmul.mubr.f32.gmra.mrb[0].mxu0 %v840
        %v1118 = vpop.f32.mrb[0].mxu0
        %v1119 = vadd.f32 %v937, %v1118
        %v1120 = vpop.f32.mrb[0].mxu0
        %v1121 = vadd.f32 %v941, %v1120
        %1122 = vmatprep.mubr.f32.mxu0 %v843
        %1123 = vmatmul.mubr.f32.gmra.mrb[0].mxu0 %v842
        %v1124 = vpop.f32.mrb[0].mxu0
        %v1125 = vadd.f32 %v937, %v1124
        %v1126 = vpop.f32.mrb[0].mxu0
        %v1127 = vadd.f32 %v941, %v1126
        %1128 = vmatprep.mubr.f32.mxu0 %v845
        %1129 = vmatmul.mubr.f32.gmra.mrb[0].mxu0 %v844
        %v1130 = vpop.f32.mrb[0].mxu0
        %v1131 = vadd.f32 %v937, %v1130
        %v1132 = vpop.f32.mrb[0].mxu0
        %v1133 = vadd.f32 %v941, %v1132
        %1134 = vmatprep.mubr.f32.mxu0 %v847
        %1135 = vmatmul.mubr.f32.gmra.mrb[0].mxu0 %v846
        %v1136 = vpop.f32.mrb[0].mxu0
        %v1137 = vadd.f32 %v937, %v1136
        %v1138 = vpop.f32.mrb[0].mxu0
        %v1139 = vadd.f32 %v941, %v1138
        %1140 = vmatprep.mubr.f32.mxu0 %v849
        %1141 = vmatmul.mubr.f32.gmra.mrb[0].mxu0 %v848
        %v1142 = vpop.f32.mrb[0].mxu0
        %v1143 = vadd.f32 %v937, %v1142
        %v1144 = vpop.f32.mrb[0].mxu0
        %v1145 = vadd.f32 %v941, %v1144
        %1146 = vmatprep.mubr.f32.mxu0 %v851
        %1147 = vmatmul.mubr.f32.gmra.mrb[0].mxu0 %v850
        %v1148 = vpop.f32.mrb[0].mxu0
        %v1149 = vadd.f32 %v937, %v1148
        %v1150 = vpop.f32.mrb[0].mxu0
        %v1151 = vadd.f32 %v941, %v1150
        %1152 = vmatprep.mubr.f32.mxu0 %v853
        %1153 = vmatmul.mubr.f32.gmra.mrb[0].mxu0 %v852
        %v1154 = vpop.f32.mrb[0].mxu0
        %v1155 = vadd.f32 %v937, %v1154
        %v1156 = vpop.f32.mrb[0].mxu0
        %v1157 = vadd.f32 %v941, %v1156
        %1158 = vmatprep.mubr.f32.mxu0 %v855
        %1159 = vmatmul.mubr.f32.gmra.mrb[0].mxu0 %v854
        %v1160 = vpop.f32.mrb[0].mxu0
        %v1161 = vadd.f32 %v937, %v1160
        %v1162 = vpop.f32.mrb[0].mxu0
        %v1163 = vadd.f32 %v941, %v1162
        %1164 = vmatprep.mubr.f32.mxu0 %v857
        %1165 = vmatmul.mubr.f32.gmra.mrb[0].mxu0 %v856
        %v1166 = vpop.f32.mrb[0].mxu0
        %v1167 = vadd.f32 %v937, %v1166
        %v1168 = vpop.f32.mrb[0].mxu0
        %v1169 = vadd.f32 %v941, %v1168
        %1170 = vmatprep.mubr.f32.mxu0 %v859
        %1171 = vmatmul.mubr.f32.gmra.mrb[0].mxu0 %v858
        %v1172 = vpop.f32.mrb[0].mxu0
        %v1173 = vadd.f32 %v937, %v1172
        %v1174 = vpop.f32.mrb[0].mxu0
        %v1175 = vadd.f32 %v941, %v1174
        %1176 = vmatprep.mubr.f32.mxu0 %v861
        %1177 = vmatmul.mubr.f32.gmra.mrb[0].mxu0 %v860
        %v1178 = vpop.f32.mrb[0].mxu0
        %v1179 = vadd.f32 %v937, %v1178
        %v1180 = vpop.f32.mrb[0].mxu0
        %v1181 = vadd.f32 %v941, %v1180
        %1182 = vmatprep.mubr.f32.mxu0 %v863
        %1183 = vmatmul.mubr.f32.gmra.mrb[0].mxu0 %v862
        %v1184 = vpop.f32.mrb[0].mxu0
        %v1185 = vadd.f32 %v937, %v1184
        %v1186 = vpop.f32.mrb[0].mxu0
        %v1187 = vadd.f32 %v941, %v1186
        %1188 = vmatprep.mubr.f32.mxu0 %v865
        %1189 = vmatmul.mubr.f32.gmra.mrb[0].mxu0 %v864
        %v1190 = vpop.f32.mrb[0].mxu0
        %v1191 = vadd.f32 %v937, %v1190
        %v1192 = vpop.f32.mrb[0].mxu0
        %v1193 = vadd.f32 %v941, %v1192
        %1194 = vmatprep.mubr.f32.mxu0 %v867
        %1195 = vmatmul.mubr.f32.gmra.mrb[0].mxu0 %v866
        %v1196 = vpop.f32.mrb[0].mxu0
        %v1197 = vadd.f32 %v937, %v1196
        %v1198 = vpop.f32.mrb[0].mxu0
        %v1199 = vadd.f32 %v941, %v1198
        %1200 = vdwg.mxu0
        %v1201 = vmax.f32 %v1011, 0.0
        %v1202 = vmax.f32 %v1013, 0.0
        %v1203 = vmax.f32 %v1017, 0.0
        %v1204 = vmax.f32 %v1019, 0.0
        %v1205 = vmax.f32 %v1023, 0.0
        %v1206 = vmax.f32 %v1025, 0.0
        %v1207 = vmax.f32 %v1029, 0.0
        %v1208 = vmax.f32 %v1031, 0.0
        %v1209 = vmax.f32 %v1035, 0.0
        %v1210 = vmax.f32 %v1037, 0.0
        %v1211 = vmax.f32 %v1041, 0.0
        %v1212 = vmax.f32 %v1043, 0.0
        %v1213 = vmax.f32 %v1047, 0.0
        %v1214 = vmax.f32 %v1049, 0.0
        %v1215 = vmax.f32 %v1053, 0.0
        %v1216 = vmax.f32 %v1055, 0.0
        %v1217 = vmax.f32 %v1059, 0.0
        %v1218 = vmax.f32 %v1061, 0.0
        %v1219 = vmax.f32 %v1065, 0.0
        %v1220 = vmax.f32 %v1067, 0.0
        %v1221 = vmax.f32 %v1071, 0.0
        %v1222 = vmax.f32 %v1073, 0.0
        %v1223 = vmax.f32 %v1077, 0.0
        %v1224 = vmax.f32 %v1079, 0.0
        %v1225 = vmax.f32 %v1083, 0.0
        %v1226 = vmax.f32 %v1085, 0.0
        %v1227 = vmax.f32 %v1089, 0.0
        %v1228 = vmax.f32 %v1091, 0.0
        %v1229 = vmax.f32 %v1095, 0.0
        %v1230 = vmax.f32 %v1097, 0.0
        %v1231 = vmax.f32 %v1101, 0.0
        %v1232 = vmax.f32 %v1103, 0.0
        %v1233 = vmax.f32 %v1107, 0.0
        %v1234 = vmax.f32 %v1109, 0.0
        %v1235 = vmax.f32 %v1113, 0.0
        %v1236 = vmax.f32 %v1115, 0.0
        %v1237 = vmax.f32 %v1119, 0.0
        %v1238 = vmax.f32 %v1121, 0.0
        %v1239 = vmax.f32 %v1125, 0.0
        %v1240 = vmax.f32 %v1127, 0.0
        %v1241 = vmax.f32 %v1131, 0.0
        %v1242 = vmax.f32 %v1133, 0.0
        %v1243 = vmax.f32 %v1137, 0.0
        %v1244 = vmax.f32 %v1139, 0.0
        %v1245 = vmax.f32 %v1143, 0.0
        %v1246 = vmax.f32 %v1145, 0.0
        %v1247 = vmax.f32 %v1149, 0.0
        %v1248 = vmax.f32 %v1151, 0.0
        %v1249 = vmax.f32 %v1155, 0.0
        %v1250 = vmax.f32 %v1157, 0.0
        %v1251 = vmax.f32 %v1161, 0.0
        %v1252 = vmax.f32 %v1163, 0.0
        %v1253 = vmax.f32 %v1167, 0.0
        %v1254 = vmax.f32 %v1169, 0.0
        %v1255 = vmax.f32 %v1173, 0.0
        %v1256 = vmax.f32 %v1175, 0.0
        %v1257 = vmax.f32 %v1179, 0.0
        %v1258 = vmax.f32 %v1181, 0.0
        %v1259 = vmax.f32 %v1185, 0.0
        %v1260 = vmax.f32 %v1187, 0.0
        %v1261 = vmax.f32 %v1191, 0.0
        %v1262 = vmax.f32 %v1193, 0.0
        %v1263 = vmax.f32 %v1197, 0.0
        %v1264 = vmax.f32 %v1199, 0.0
        %1265 = vst [vmem:[#allocation3] sm:$0xff] %v1201
        %1266 = vst [vmem:[#allocation3 + $0x8] sm:$0xff] %v1202
        %1267 = vst [vmem:[#allocation3 + $0x10] sm:$0xff] %v1203
        %1268 = vst [vmem:[#allocation3 + $0x18] sm:$0xff] %v1204
        %1269 = vst [vmem:[#allocation3 + $0x20] sm:$0xff] %v1205
        %1270 = vst [vmem:[#allocation3 + $0x28] sm:$0xff] %v1206
        %1271 = vst [vmem:[#allocation3 + $0x30] sm:$0xff] %v1207
        %1272 = vst [vmem:[#allocation3 + $0x38] sm:$0xff] %v1208
        %1273 = vst [vmem:[#allocation3 + $0x40] sm:$0xff] %v1209
        %1274 = vst [vmem:[#allocation3 + $0x48] sm:$0xff] %v1210
        %1275 = vst [vmem:[#allocation3 + $0x50] sm:$0xff] %v1211
        %1276 = vst [vmem:[#allocation3 + $0x58] sm:$0xff] %v1212
        %1277 = vst [vmem:[#allocation3 + $0x60] sm:$0xff] %v1213
        %1278 = vst [vmem:[#allocation3 + $0x68] sm:$0xff] %v1214
        %1279 = vst [vmem:[#allocation3 + $0x70] sm:$0xff] %v1215
        %1280 = vst [vmem:[#allocation3 + $0x78] sm:$0xff] %v1216
        %1281 = vst [vmem:[#allocation3 + $0x80] sm:$0xff] %v1217
        %1282 = vst [vmem:[#allocation3 + $0x88] sm:$0xff] %v1218
        %1283 = vst [vmem:[#allocation3 + $0x90] sm:$0xff] %v1219
        %1284 = vst [vmem:[#allocation3 + $0x98] sm:$0xff] %v1220
        %1285 = vst [vmem:[#allocation3 + $0xa0] sm:$0xff] %v1221
        %1286 = vst [vmem:[#allocation3 + $0xa8] sm:$0xff] %v1222
        %1287 = vst [vmem:[#allocation3 + $0xb0] sm:$0xff] %v1223
        %1288 = vst [vmem:[#allocation3 + $0xb8] sm:$0xff] %v1224
        %1289 = vst [vmem:[#allocation3 + $0xc0] sm:$0xff] %v1225
        %1290 = vst [vmem:[#allocation3 + $0xc8] sm:$0xff] %v1226
        %1291 = vst [vmem:[#allocation3 + $0xd0] sm:$0xff] %v1227
        %1292 = vst [vmem:[#allocation3 + $0xd8] sm:$0xff] %v1228
        %1293 = vst [vmem:[#allocation3 + $0xe0] sm:$0xff] %v1229
        %1294 = vst [vmem:[#allocation3 + $0xe8] sm:$0xff] %v1230
        %1295 = vst [vmem:[#allocation3 + $0xf0] sm:$0xff] %v1231
        %1296 = vst [vmem:[#allocation3 + $0xf8] sm:$0xff] %v1232
        %1297 = vst [vmem:[#allocation3 + $0x100] sm:$0xff] %v1233
        %1298 = vst [vmem:[#allocation3 + $0x108] sm:$0xff] %v1234
        %1299 = vst [vmem:[#allocation3 + $0x110] sm:$0xff] %v1235
        %1300 = vst [vmem:[#allocation3 + $0x118] sm:$0xff] %v1236
        %1301 = vst [vmem:[#allocation3 + $0x120] sm:$0xff] %v1237
        %1302 = vst [vmem:[#allocation3 + $0x128] sm:$0xff] %v1238
        %1303 = vst [vmem:[#allocation3 + $0x130] sm:$0xff] %v1239
        %1304 = vst [vmem:[#allocation3 + $0x138] sm:$0xff] %v1240
        %1305 = vst [vmem:[#allocation3 + $0x140] sm:$0xff] %v1241
        %1306 = vst [vmem:[#allocation3 + $0x148] sm:$0xff] %v1242
        %1307 = vst [vmem:[#allocation3 + $0x150] sm:$0xff] %v1243
        %1308 = vst [vmem:[#allocation3 + $0x158] sm:$0xff] %v1244
        %1309 = vst [vmem:[#allocation3 + $0x160] sm:$0xff] %v1245
        %1310 = vst [vmem:[#allocation3 + $0x168] sm:$0xff] %v1246
        %1311 = vst [vmem:[#allocation3 + $0x170] sm:$0xff] %v1247
        %1312 = vst [vmem:[#allocation3 + $0x178] sm:$0xff] %v1248
        %1313 = vst [vmem:[#allocation3 + $0x180] sm:$0xff] %v1249
        %1314 = vst [vmem:[#allocation3 + $0x188] sm:$0xff] %v1250
        %1315 = vst [vmem:[#allocation3 + $0x190] sm:$0xff] %v1251
        %1316 = vst [vmem:[#allocation3 + $0x198] sm:$0xff] %v1252
        %1317 = vst [vmem:[#allocation3 + $0x1a0] sm:$0xff] %v1253
        %1318 = vst [vmem:[#allocation3 + $0x1a8] sm:$0xff] %v1254
        %1319 = vst [vmem:[#allocation3 + $0x1b0] sm:$0xff] %v1255
        %1320 = vst [vmem:[#allocation3 + $0x1b8] sm:$0xff] %v1256
        %1321 = vst [vmem:[#allocation3 + $0x1c0] sm:$0xff] %v1257
        %1322 = vst [vmem:[#allocation3 + $0x1c8] sm:$0xff] %v1258
        %1323 = vst [vmem:[#allocation3 + $0x1d0] sm:$0xff] %v1259
        %1324 = vst [vmem:[#allocation3 + $0x1d8] sm:$0xff] %v1260
        %1325 = vst [vmem:[#allocation3 + $0x1e0] sm:$0xff] %v1261
        %1326 = vst [vmem:[#allocation3 + $0x1e8] sm:$0xff] %v1262
        %1327 = vst [vmem:[#allocation3 + $0x1f0] sm:$0xff] %v1263
        %1328 = vst [vmem:[#allocation3 + $0x1f8] sm:$0xff] %v1264
        %v1329 = vld [vmem:[#allocation3] sm:$0xff]
        %v1330 = vld [vmem:[#allocation3 + $0x8] sm:$0xff]
        %v1331 = vld [vmem:[#allocation3 + $0x10] sm:$0xff]
        %v1332 = vld [vmem:[#allocation3 + $0x18] sm:$0xff]
        %v1333 = vld [vmem:[#allocation3 + $0x20] sm:$0xff]
        %v1334 = vld [vmem:[#allocation3 + $0x28] sm:$0xff]
        %v1335 = vld [vmem:[#allocation3 + $0x30] sm:$0xff]
        %v1336 = vld [vmem:[#allocation3 + $0x38] sm:$0xff]
        %v1337 = vld [vmem:[#allocation3 + $0x40] sm:$0xff]
        %v1338 = vld [vmem:[#allocation3 + $0x48] sm:$0xff]
        %v1339 = vld [vmem:[#allocation3 + $0x50] sm:$0xff]
        %v1340 = vld [vmem:[#allocation3 + $0x58] sm:$0xff]
        %v1341 = vld [vmem:[#allocation3 + $0x60] sm:$0xff]
        %v1342 = vld [vmem:[#allocation3 + $0x68] sm:$0xff]
        %v1343 = vld [vmem:[#allocation3 + $0x70] sm:$0xff]
        %v1344 = vld [vmem:[#allocation3 + $0x78] sm:$0xff]
        %v1345 = vld [vmem:[#allocation3 + $0x80] sm:$0xff]
        %v1346 = vld [vmem:[#allocation3 + $0x88] sm:$0xff]
        %v1347 = vld [vmem:[#allocation3 + $0x90] sm:$0xff]
        %v1348 = vld [vmem:[#allocation3 + $0x98] sm:$0xff]
        %v1349 = vld [vmem:[#allocation3 + $0xa0] sm:$0xff]
        %v1350 = vld [vmem:[#allocation3 + $0xa8] sm:$0xff]
        %v1351 = vld [vmem:[#allocation3 + $0xb0] sm:$0xff]
        %v1352 = vld [vmem:[#allocation3 + $0xb8] sm:$0xff]
        %v1353 = vld [vmem:[#allocation3 + $0xc0] sm:$0xff]
        %v1354 = vld [vmem:[#allocation3 + $0xc8] sm:$0xff]
        %v1355 = vld [vmem:[#allocation3 + $0xd0] sm:$0xff]
        %v1356 = vld [vmem:[#allocation3 + $0xd8] sm:$0xff]
        %v1357 = vld [vmem:[#allocation3 + $0xe0] sm:$0xff]
        %v1358 = vld [vmem:[#allocation3 + $0xe8] sm:$0xff]
        %v1359 = vld [vmem:[#allocation3 + $0xf0] sm:$0xff]
        %v1360 = vld [vmem:[#allocation3 + $0xf8] sm:$0xff]
        %v1361 = vld [vmem:[#allocation3 + $0x100] sm:$0xff]
        %v1362 = vld [vmem:[#allocation3 + $0x108] sm:$0xff]
        %v1363 = vld [vmem:[#allocation3 + $0x110] sm:$0xff]
        %v1364 = vld [vmem:[#allocation3 + $0x118] sm:$0xff]
        %v1365 = vld [vmem:[#allocation3 + $0x120] sm:$0xff]
        %v1366 = vld [vmem:[#allocation3 + $0x128] sm:$0xff]
        %v1367 = vld [vmem:[#allocation3 + $0x130] sm:$0xff]
        %v1368 = vld [vmem:[#allocation3 + $0x138] sm:$0xff]
        %v1369 = vld [vmem:[#allocation3 + $0x140] sm:$0xff]
        %v1370 = vld [vmem:[#allocation3 + $0x148] sm:$0xff]
        %v1371 = vld [vmem:[#allocation3 + $0x150] sm:$0xff]
        %v1372 = vld [vmem:[#allocation3 + $0x158] sm:$0xff]
        %v1373 = vld [vmem:[#allocation3 + $0x160] sm:$0xff]
        %v1374 = vld [vmem:[#allocation3 + $0x168] sm:$0xff]
        %v1375 = vld [vmem:[#allocation3 + $0x170] sm:$0xff]
        %v1376 = vld [vmem:[#allocation3 + $0x178] sm:$0xff]
        %v1377 = vld [vmem:[#allocation3 + $0x180] sm:$0xff]
        %v1378 = vld [vmem:[#allocation3 + $0x188] sm:$0xff]
        %v1379 = vld [vmem:[#allocation3 + $0x190] sm:$0xff]
        %v1380 = vld [vmem:[#allocation3 + $0x198] sm:$0xff]
        %v1381 = vld [vmem:[#allocation3 + $0x1a0] sm:$0xff]
        %v1382 = vld [vmem:[#allocation3 + $0x1a8] sm:$0xff]
        %v1383 = vld [vmem:[#allocation3 + $0x1b0] sm:$0xff]
        %v1384 = vld [vmem:[#allocation3 + $0x1b8] sm:$0xff]
        %v1385 = vld [vmem:[#allocation3 + $0x1c0] sm:$0xff]
        %v1386 = vld [vmem:[#allocation3 + $0x1c8] sm:$0xff]
        %v1387 = vld [vmem:[#allocation3 + $0x1d0] sm:$0xff]
        %v1388 = vld [vmem:[#allocation3 + $0x1d8] sm:$0xff]
        %v1389 = vld [vmem:[#allocation3 + $0x1e0] sm:$0xff]
        %v1390 = vld [vmem:[#allocation3 + $0x1e8] sm:$0xff]
        %v1391 = vld [vmem:[#allocation3 + $0x1f0] sm:$0xff]
        %v1392 = vld [vmem:[#allocation3 + $0x1f8] sm:$0xff]
        %v1393 = vld [vmem:[#allocation10] sm:$0xff]
        %v1394 = vld [vmem:[#allocation10 + $0x8] sm:$0xff]
        %v1395 = vld [vmem:[#allocation10 + $0x10] sm:$0xff]
        %v1396 = vld [vmem:[#allocation10 + $0x18] sm:$0xff]
        %v1397 = vld [vmem:[#allocation10 + $0x20] sm:$0xff]
        %v1398 = vld [vmem:[#allocation10 + $0x28] sm:$0xff]
        %v1399 = vld [vmem:[#allocation10 + $0x30] sm:$0xff]
        %v1400 = vld [vmem:[#allocation10 + $0x38] sm:$0xff]
        %v1401 = vld [vmem:[#allocation10 + $0x40] sm:$0xff]
        %v1402 = vld [vmem:[#allocation10 + $0x48] sm:$0xff]
        %v1403 = vld [vmem:[#allocation10 + $0x50] sm:$0xff]
        %v1404 = vld [vmem:[#allocation10 + $0x58] sm:$0xff]
        %v1405 = vld [vmem:[#allocation10 + $0x60] sm:$0xff]
        %v1406 = vld [vmem:[#allocation10 + $0x68] sm:$0xff]
        %v1407 = vld [vmem:[#allocation10 + $0x70] sm:$0xff]
        %v1408 = vld [vmem:[#allocation10 + $0x78] sm:$0xff]
        %v1409 = vld [vmem:[#allocation10 + $0x80] sm:$0xff]
        %v1410 = vld [vmem:[#allocation10 + $0x88] sm:$0xff]
        %v1411 = vld [vmem:[#allocation10 + $0x90] sm:$0xff]
        %v1412 = vld [vmem:[#allocation10 + $0x98] sm:$0xff]
        %v1413 = vld [vmem:[#allocation10 + $0xa0] sm:$0xff]
        %v1414 = vld [vmem:[#allocation10 + $0xa8] sm:$0xff]
        %v1415 = vld [vmem:[#allocation10 + $0xb0] sm:$0xff]
        %v1416 = vld [vmem:[#allocation10 + $0xb8] sm:$0xff]
        %v1417 = vld [vmem:[#allocation10 + $0xc0] sm:$0xff]
        %v1418 = vld [vmem:[#allocation10 + $0xc8] sm:$0xff]
        %v1419 = vld [vmem:[#allocation10 + $0xd0] sm:$0xff]
        %v1420 = vld [vmem:[#allocation10 + $0xd8] sm:$0xff]
        %v1421 = vld [vmem:[#allocation10 + $0xe0] sm:$0xff]
        %v1422 = vld [vmem:[#allocation10 + $0xe8] sm:$0xff]
        %v1423 = vld [vmem:[#allocation10 + $0xf0] sm:$0xff]
        %v1424 = vld [vmem:[#allocation10 + $0xf8] sm:$0xff]
        %v1425 = vld [vmem:[%s6] sm:$0x1]
        %v1427 = vlaneseq
        %v1428 = vshrl.u32 %v1427, 7
        %v1429 = vsub.s32 0, %v1428
        %v1430 = vrot.slane %v1425, %v1429
        %1432 = vmatprep.subr.mxu0 0.0
        %1433 = vmatpush1.msra.mxu0 %v1393
        %1434 = vmatprep.subr.mxu0 0.0
        %1435 = vmatpush1.msra.mxu0 %v1394
        %1436 = vmatprep.subr.mxu0 0.0
        %1437 = vmatpush1.msra.mxu0 %v1395
        %1438 = vmatprep.subr.mxu0 0.0
        %1439 = vmatpush1.msra.mxu0 %v1396
        %1440 = vmatprep.subr.mxu0 0.0
        %1441 = vmatpush1.msra.mxu0 %v1397
        %1442 = vmatprep.subr.mxu0 0.0
        %1443 = vmatpush1.msra.mxu0 %v1398
        %1444 = vmatprep.subr.mxu0 0.0
        %1445 = vmatpush1.msra.mxu0 %v1399
        %1446 = vmatprep.subr.mxu0 0.0
        %1447 = vmatpush1.msra.mxu0 %v1400
        %1448 = vmatprep.subr.mxu0 0.0
        %1449 = vmatpush1.msra.mxu0 %v1401
        %1450 = vmatprep.subr.mxu0 0.0
        %1451 = vmatpush1.msra.mxu0 %v1402
        %1452 = vmatprep.subr.mxu0 0.0
        %1453 = vmatpush1.msra.mxu0 %v1403
        %1454 = vmatprep.subr.mxu0 0.0
        %1455 = vmatpush1.msra.mxu0 %v1404
        %1456 = vmatprep.subr.mxu0 0.0
        %1457 = vmatpush1.msra.mxu0 %v1405
        %1458 = vmatprep.subr.mxu0 0.0
        %1459 = vmatpush1.msra.mxu0 %v1406
        %1460 = vmatprep.subr.mxu0 0.0
        %1461 = vmatpush1.msra.mxu0 %v1407
        %1462 = vmatprep.subr.mxu0 0.0
        %1463 = vmatpush1.msra.mxu0 %v1408
        %1464 = vmatprep.subr.mxu0 0.0
        %1465 = vmatpush1.msra.mxu0 %v1409
        %1466 = vmatprep.subr.mxu0 0.0
        %1467 = vmatpush1.msra.mxu0 %v1410
        %1468 = vmatprep.subr.mxu0 0.0
        %1469 = vmatpush1.msra.mxu0 %v1411
        %1470 = vmatprep.subr.mxu0 0.0
        %1471 = vmatpush1.msra.mxu0 %v1412
        %1472 = vmatprep.subr.mxu0 0.0
        %1473 = vmatpush1.msra.mxu0 %v1413
        %1474 = vmatprep.subr.mxu0 0.0
        %1475 = vmatpush1.msra.mxu0 %v1414
        %1476 = vmatprep.subr.mxu0 0.0
        %1477 = vmatpush1.msra.mxu0 %v1415
        %1478 = vmatprep.subr.mxu0 0.0
        %1479 = vmatpush1.msra.mxu0 %v1416
        %1480 = vmatprep.subr.mxu0 0.0
        %1481 = vmatpush1.msra.mxu0 %v1417
        %1482 = vmatprep.subr.mxu0 0.0
        %1483 = vmatpush1.msra.mxu0 %v1418
        %1484 = vmatprep.subr.mxu0 0.0
        %1485 = vmatpush1.msra.mxu0 %v1419
        %1486 = vmatprep.subr.mxu0 0.0
        %1487 = vmatpush1.msra.mxu0 %v1420
        %1488 = vmatprep.subr.mxu0 0.0
        %1489 = vmatpush1.msra.mxu0 %v1421
        %1490 = vmatprep.subr.mxu0 0.0
        %1491 = vmatpush1.msra.mxu0 %v1422
        %1492 = vmatprep.subr.mxu0 0.0
        %1493 = vmatpush1.msra.mxu0 %v1423
        %1494 = vmatprep.subr.mxu0 0.0
        %1495 = vmatpush1.msra.mxu0 %v1424
        %1496 = vmatprep.mubr.f32.mxu0 %v1330
        %1497 = vmatmul.mubr.f32.gmra.mrb[0].mxu0 %v1329
        %v1498 = vpop.f32.mrb[0].mxu0
        %v1499 = vadd.f32 %v1430, %v1498
        %v1500 = vpop.f32.mrb[0].mxu0
        %1501 = vmatprep.mubr.f32.mxu0 %v1332
        %1502 = vmatmul.mubr.f32.gmra.mrb[0].mxu0 %v1331
        %v1503 = vpop.f32.mrb[0].mxu0
        %v1504 = vadd.f32 %v1430, %v1503
        %v1505 = vpop.f32.mrb[0].mxu0
        %1506 = vmatprep.mubr.f32.mxu0 %v1334
        %1507 = vmatmul.mubr.f32.gmra.mrb[0].mxu0 %v1333
        %v1508 = vpop.f32.mrb[0].mxu0
        %v1509 = vadd.f32 %v1430, %v1508
        %v1510 = vpop.f32.mrb[0].mxu0
        %1511 = vmatprep.mubr.f32.mxu0 %v1336
        %1512 = vmatmul.mubr.f32.gmra.mrb[0].mxu0 %v1335
        %v1513 = vpop.f32.mrb[0].mxu0
        %v1514 = vadd.f32 %v1430, %v1513
        %v1515 = vpop.f32.mrb[0].mxu0
        %1516 = vmatprep.mubr.f32.mxu0 %v1338
        %1517 = vmatmul.mubr.f32.gmra.mrb[0].mxu0 %v1337
        %v1518 = vpop.f32.mrb[0].mxu0
        %v1519 = vadd.f32 %v1430, %v1518
        %v1520 = vpop.f32.mrb[0].mxu0
        %1521 = vmatprep.mubr.f32.mxu0 %v1340
        %1522 = vmatmul.mubr.f32.gmra.mrb[0].mxu0 %v1339
        %v1523 = vpop.f32.mrb[0].mxu0
        %v1524 = vadd.f32 %v1430, %v1523
        %v1525 = vpop.f32.mrb[0].mxu0
        %1526 = vmatprep.mubr.f32.mxu0 %v1342
        %1527 = vmatmul.mubr.f32.gmra.mrb[0].mxu0 %v1341
        %v1528 = vpop.f32.mrb[0].mxu0
        %v1529 = vadd.f32 %v1430, %v1528
        %v1530 = vpop.f32.mrb[0].mxu0
        %1531 = vmatprep.mubr.f32.mxu0 %v1344
        %1532 = vmatmul.mubr.f32.gmra.mrb[0].mxu0 %v1343
        %v1533 = vpop.f32.mrb[0].mxu0
        %v1534 = vadd.f32 %v1430, %v1533
        %v1535 = vpop.f32.mrb[0].mxu0
        %1536 = vmatprep.mubr.f32.mxu0 %v1346
        %1537 = vmatmul.mubr.f32.gmra.mrb[0].mxu0 %v1345
        %v1538 = vpop.f32.mrb[0].mxu0
        %v1539 = vadd.f32 %v1430, %v1538
        %v1540 = vpop.f32.mrb[0].mxu0
        %1541 = vmatprep.mubr.f32.mxu0 %v1348
        %1542 = vmatmul.mubr.f32.gmra.mrb[0].mxu0 %v1347
        %v1543 = vpop.f32.mrb[0].mxu0
        %v1544 = vadd.f32 %v1430, %v1543
        %v1545 = vpop.f32.mrb[0].mxu0
        %1546 = vmatprep.mubr.f32.mxu0 %v1350
        %1547 = vmatmul.mubr.f32.gmra.mrb[0].mxu0 %v1349
        %v1548 = vpop.f32.mrb[0].mxu0
        %v1549 = vadd.f32 %v1430, %v1548
        %v1550 = vpop.f32.mrb[0].mxu0
        %1551 = vmatprep.mubr.f32.mxu0 %v1352
        %1552 = vmatmul.mubr.f32.gmra.mrb[0].mxu0 %v1351
        %v1553 = vpop.f32.mrb[0].mxu0
        %v1554 = vadd.f32 %v1430, %v1553
        %v1555 = vpop.f32.mrb[0].mxu0
        %1556 = vmatprep.mubr.f32.mxu0 %v1354
        %1557 = vmatmul.mubr.f32.gmra.mrb[0].mxu0 %v1353
        %v1558 = vpop.f32.mrb[0].mxu0
        %v1559 = vadd.f32 %v1430, %v1558
        %v1560 = vpop.f32.mrb[0].mxu0
        %1561 = vmatprep.mubr.f32.mxu0 %v1356
        %1562 = vmatmul.mubr.f32.gmra.mrb[0].mxu0 %v1355
        %v1563 = vpop.f32.mrb[0].mxu0
        %v1564 = vadd.f32 %v1430, %v1563
        %v1565 = vpop.f32.mrb[0].mxu0
        %1566 = vmatprep.mubr.f32.mxu0 %v1358
        %1567 = vmatmul.mubr.f32.gmra.mrb[0].mxu0 %v1357
        %v1568 = vpop.f32.mrb[0].mxu0
        %v1569 = vadd.f32 %v1430, %v1568
        %v1570 = vpop.f32.mrb[0].mxu0
        %1571 = vmatprep.mubr.f32.mxu0 %v1360
        %1572 = vmatmul.mubr.f32.gmra.mrb[0].mxu0 %v1359
        %v1573 = vpop.f32.mrb[0].mxu0
        %v1574 = vadd.f32 %v1430, %v1573
        %v1575 = vpop.f32.mrb[0].mxu0
        %1576 = vmatprep.mubr.f32.mxu0 %v1362
        %1577 = vmatmul.mubr.f32.gmra.mrb[0].mxu0 %v1361
        %v1578 = vpop.f32.mrb[0].mxu0
        %v1579 = vadd.f32 %v1430, %v1578
        %v1580 = vpop.f32.mrb[0].mxu0
        %1581 = vmatprep.mubr.f32.mxu0 %v1364
        %1582 = vmatmul.mubr.f32.gmra.mrb[0].mxu0 %v1363
        %v1583 = vpop.f32.mrb[0].mxu0
        %v1584 = vadd.f32 %v1430, %v1583
        %v1585 = vpop.f32.mrb[0].mxu0
        %1586 = vmatprep.mubr.f32.mxu0 %v1366
        %1587 = vmatmul.mubr.f32.gmra.mrb[0].mxu0 %v1365
        %v1588 = vpop.f32.mrb[0].mxu0
        %v1589 = vadd.f32 %v1430, %v1588
        %v1590 = vpop.f32.mrb[0].mxu0
        %1591 = vmatprep.mubr.f32.mxu0 %v1368
        %1592 = vmatmul.mubr.f32.gmra.mrb[0].mxu0 %v1367
        %v1593 = vpop.f32.mrb[0].mxu0
        %v1594 = vadd.f32 %v1430, %v1593
        %v1595 = vpop.f32.mrb[0].mxu0
        %1596 = vmatprep.mubr.f32.mxu0 %v1370
        %1597 = vmatmul.mubr.f32.gmra.mrb[0].mxu0 %v1369
        %v1598 = vpop.f32.mrb[0].mxu0
        %v1599 = vadd.f32 %v1430, %v1598
        %v1600 = vpop.f32.mrb[0].mxu0
        %1601 = vmatprep.mubr.f32.mxu0 %v1372
        %1602 = vmatmul.mubr.f32.gmra.mrb[0].mxu0 %v1371
        %v1603 = vpop.f32.mrb[0].mxu0
        %v1604 = vadd.f32 %v1430, %v1603
        %v1605 = vpop.f32.mrb[0].mxu0
        %1606 = vmatprep.mubr.f32.mxu0 %v1374
        %1607 = vmatmul.mubr.f32.gmra.mrb[0].mxu0 %v1373
        %v1608 = vpop.f32.mrb[0].mxu0
        %v1609 = vadd.f32 %v1430, %v1608
        %v1610 = vpop.f32.mrb[0].mxu0
        %1611 = vmatprep.mubr.f32.mxu0 %v1376
        %1612 = vmatmul.mubr.f32.gmra.mrb[0].mxu0 %v1375
        %v1613 = vpop.f32.mrb[0].mxu0
        %v1614 = vadd.f32 %v1430, %v1613
        %v1615 = vpop.f32.mrb[0].mxu0
        %1616 = vmatprep.mubr.f32.mxu0 %v1378
        %1617 = vmatmul.mubr.f32.gmra.mrb[0].mxu0 %v1377
        %v1618 = vpop.f32.mrb[0].mxu0
        %v1619 = vadd.f32 %v1430, %v1618
        %v1620 = vpop.f32.mrb[0].mxu0
        %1621 = vmatprep.mubr.f32.mxu0 %v1380
        %1622 = vmatmul.mubr.f32.gmra.mrb[0].mxu0 %v1379
        %v1623 = vpop.f32.mrb[0].mxu0
        %v1624 = vadd.f32 %v1430, %v1623
        %v1625 = vpop.f32.mrb[0].mxu0
        %1626 = vmatprep.mubr.f32.mxu0 %v1382
        %1627 = vmatmul.mubr.f32.gmra.mrb[0].mxu0 %v1381
        %v1628 = vpop.f32.mrb[0].mxu0
        %v1629 = vadd.f32 %v1430, %v1628
        %v1630 = vpop.f32.mrb[0].mxu0
        %1631 = vmatprep.mubr.f32.mxu0 %v1384
        %1632 = vmatmul.mubr.f32.gmra.mrb[0].mxu0 %v1383
        %v1633 = vpop.f32.mrb[0].mxu0
        %v1634 = vadd.f32 %v1430, %v1633
        %v1635 = vpop.f32.mrb[0].mxu0
        %1636 = vmatprep.mubr.f32.mxu0 %v1386
        %1637 = vmatmul.mubr.f32.gmra.mrb[0].mxu0 %v1385
        %v1638 = vpop.f32.mrb[0].mxu0
        %v1639 = vadd.f32 %v1430, %v1638
        %v1640 = vpop.f32.mrb[0].mxu0
        %1641 = vmatprep.mubr.f32.mxu0 %v1388
        %1642 = vmatmul.mubr.f32.gmra.mrb[0].mxu0 %v1387
        %v1643 = vpop.f32.mrb[0].mxu0
        %v1644 = vadd.f32 %v1430, %v1643
        %v1645 = vpop.f32.mrb[0].mxu0
        %1646 = vmatprep.mubr.f32.mxu0 %v1390
        %1647 = vmatmul.mubr.f32.gmra.mrb[0].mxu0 %v1389
        %v1648 = vpop.f32.mrb[0].mxu0
        %v1649 = vadd.f32 %v1430, %v1648
        %v1650 = vpop.f32.mrb[0].mxu0
        %1651 = vmatprep.mubr.f32.mxu0 %v1392
        %1652 = vmatmul.mubr.f32.gmra.mrb[0].mxu0 %v1391
        %v1653 = vpop.f32.mrb[0].mxu0
        %v1654 = vadd.f32 %v1430, %v1653
        %v1655 = vpop.f32.mrb[0].mxu0
        %1656 = vdwg.mxu0
        %1657 = vst [vmem:[%s340] sm:$0xff] %v1499
        %1658 = vst [vmem:[%s340 + $0x8] sm:$0xff] %v1504
        %1659 = vst [vmem:[%s340 + $0x10] sm:$0xff] %v1509
        %1660 = vst [vmem:[%s340 + $0x18] sm:$0xff] %v1514
        %1661 = vst [vmem:[%s340 + $0x20] sm:$0xff] %v1519
        %1662 = vst [vmem:[%s340 + $0x28] sm:$0xff] %v1524
        %1663 = vst [vmem:[%s340 + $0x30] sm:$0xff] %v1529
        %1664 = vst [vmem:[%s340 + $0x38] sm:$0xff] %v1534
        %1665 = vst [vmem:[%s340 + $0x40] sm:$0xff] %v1539
        %1666 = vst [vmem:[%s340 + $0x48] sm:$0xff] %v1544
        %1667 = vst [vmem:[%s340 + $0x50] sm:$0xff] %v1549
        %1668 = vst [vmem:[%s340 + $0x58] sm:$0xff] %v1554
        %1669 = vst [vmem:[%s340 + $0x60] sm:$0xff] %v1559
        %1670 = vst [vmem:[%s340 + $0x68] sm:$0xff] %v1564
        %1671 = vst [vmem:[%s340 + $0x70] sm:$0xff] %v1569
        %1672 = vst [vmem:[%s340 + $0x78] sm:$0xff] %v1574
        %1673 = vst [vmem:[%s340 + $0x80] sm:$0xff] %v1579
        %1674 = vst [vmem:[%s340 + $0x88] sm:$0xff] %v1584
        %1675 = vst [vmem:[%s340 + $0x90] sm:$0xff] %v1589
        %1676 = vst [vmem:[%s340 + $0x98] sm:$0xff] %v1594
        %1677 = vst [vmem:[%s340 + $0xa0] sm:$0xff] %v1599
        %1678 = vst [vmem:[%s340 + $0xa8] sm:$0xff] %v1604
        %1679 = vst [vmem:[%s340 + $0xb0] sm:$0xff] %v1609
        %1680 = vst [vmem:[%s340 + $0xb8] sm:$0xff] %v1614
        %1681 = vst [vmem:[%s340 + $0xc0] sm:$0xff] %v1619
        %1682 = vst [vmem:[%s340 + $0xc8] sm:$0xff] %v1624
        %1683 = vst [vmem:[%s340 + $0xd0] sm:$0xff] %v1629
        %1684 = vst [vmem:[%s340 + $0xd8] sm:$0xff] %v1634
        %1685 = vst [vmem:[%s340 + $0xe0] sm:$0xff] %v1639
        %1686 = vst [vmem:[%s340 + $0xe8] sm:$0xff] %v1644
        %1687 = vst [vmem:[%s340 + $0xf0] sm:$0xff] %v1649
        %1688 = vst [vmem:[%s340 + $0xf8] sm:$0xff] %v1654
        %s1689 = sand.u32 %s186, 1
        %s1690 = scalar_lea.sflag [#allocation6], %s1689
        %s1691 = sand.u32 %s186, 1
        %s1692 = smul.addr %s1691, 256
        %s1693 = scalar_lea.vmem [#allocation12], %s1692
        // Predicated region
        $region65: #{tpu_custom_call.1} parent=47 // pred_check
          %p1694 = pneg %p196
        $region66: #{tpu_custom_call.1} parent=47 // pred_check_branch
          %1696 = sbr.rel (%p1694) target = $region68
        $region67: #{tpu_custom_call.1} parent=47 // pred_region
          %s1697 = smul.u32 32, %s26
          %s1699 = ssub.s32 4096, 4096
          %1700 = vsyncadd %s1690, %s1699
          %s1701 = smul.addr %s1697, 128
          %s1702 = scalar_lea.hbm %s7, %s1701
          %s1703 = sshll.u32 %s1693, 4
          %s1704 = int_to_ptr.vmem [resolvable:$true] %s1703
          %1709 = dma.vmem_to_hbm [thread:$0]  %s1704, 4096, %s1702, %s1690, 128, 128, 8
        $region68: #{tpu_custom_call.1} parent=47 // pred_fallthru
          _
      $region48: #{tpu_custom_call.1} parent=5 // pred_fallthru
        _
      %p1710 = scmp.le.s32.totalorder 2, %s21
      // Predicated region
      $region69: #{tpu_custom_call.1} parent=5 // pred_check
        %p1711 = pneg %p1710
      $region70: #{tpu_custom_call.1} parent=5 // pred_check_branch
        %1713 = sbr.rel (%p1711) target = $region72
      $region71: #{tpu_custom_call.1} parent=5 // pred_region
        %s1714 = ssub.s32 %s21, 2
        // Predicated region
        $region73: #{tpu_custom_call.1} parent=71 // pred_check
          %p1715 = pneg %p202
        $region74: #{tpu_custom_call.1} parent=71 // pred_check_branch
          %1717 = sbr.rel (%p1715) target = $region76
        $region75: #{tpu_custom_call.1} parent=71 // pred_region
          %s1718 = sand.u32 %s187, 1
          %s1719 = scalar_lea.sflag [#allocation6], %s1718
          %s1720 = sand.u32 %s187, 1
          %s1721 = smul.addr %s1720, 256
          %s1722 = scalar_lea.vmem [#allocation12], %s1721
          %1723 = dma.done %s1719, 4096
        $region76: #{tpu_custom_call.1} parent=71 // pred_fallthru
          _
      $region72: #{tpu_custom_call.1} parent=5 // pred_fallthru
        _
    $region6: #{tpu_custom_call.1} parent=1 // loop_footer
      %s25 = sadd.s32 1, %s21
    $region7: #{tpu_custom_call.1} parent=1 // loop_footer_branch
      %20 = sbr.rel target = $region3
    $region8: #{tpu_custom_call.1} parent=1 // loop_exit
      _
    %1724 = vsyncpa [#allocation5], 1
    %s1725 = scalar_lea.sflag [#allocation5], 1
    %1726 = vsyncpa %s1725, 1
    %1727 = vsyncpa [#allocation8], 1
    %1728 = vsyncpa [#allocation11], 1
    %1729 = vsyncpa [#allocation6], 1
    %s1730 = scalar_lea.sflag [#allocation6], 1
    %1731 = vsyncpa %s1730, 1

</llo_original>
